<compile_context>
chip_gen: v7x
topology: tpu7x:2x2x1
jax: 0.10.0
libtpu: 0.0.40
codegen_flags: <defaults>
</compile_context>

<pallas_src>
import functools

import jax
import jax.numpy as jnp
import numpy as np
from jax.experimental import pallas as pl
from jax.experimental.pallas import tpu as pltpu

NEG_SLOPE = 0.2      # LeakyReLU slope used by MTA
BN_EPS = 1e-5
PART = 4             # MTA `part`


# ----------------------------- fused Pallas kernel ----------------------------------------------

def _mta_kernel(x_ref, m_ref, wm_ref, shift_ref, o_ref, *,
                n_branch, ksize, c4v, b_blk, pad, t_len):
    """Whole MTA forward for B_BLK samples (one grid step).

    x_ref     : (B_BLK, C*V, T)     input rows ordered (channel-major, node-minor): row = c*V + v
    m_ref     : (n_branch,c4v,c4v)  folded (BN-scale * SimpleGC) matrix per branch, bfloat16
    wm_ref    : (ksize, c4v, T)     mask-folded depthwise conv weights: w[r,j] * valid[j,t]
    shift_ref : (n_branch, c4v, 1)  per-row shift = M_fold @ conv_bias + BN-shift
    o_ref     : (B_BLK, C*V, T)     output, same row ordering as the input
    """
    for b in range(b_blk):                                          # unrolled over the sample block
        state = x_ref[b, 0:c4v, :]                                  # x_splits[0]
        for i in range(n_branch):                                   # 3 sequential branches
            if i > 0:
                state = state + x_ref[b, i * c4v:(i + 1) * c4v, :]  # split = split + x_splits[i]

            # depthwise temporal conv: u[r,t] = sum_j w[r,j] * state[r, t+j-pad]   (zero padded)
            # -> lane rolls on the XLU + mask-folded weight MACs on the VPU (no MXU work at all)
            u = wm_ref[pad] * state                                 # centre tap: no roll, mask == 1
            for j in range(ksize):
                if j == pad:
                    continue
                sh = (pad - j) % t_len                              # non-negative circular shift
                u = u + wm_ref[j] * pltpu.roll(state, sh, 1)        # wrapped lanes zeroed by wm

            # SimpleGC (BN scale folded into M, bf16 operands, f32 accumulate)
            # + folded (conv bias, BN shift) + LeakyReLU(0.2) = max(y, 0.2*y)
            y = jnp.dot(m_ref[i], u.astype(jnp.bfloat16),
                        preferred_element_type=jnp.float32) + shift_ref[i]
            y = jnp.maximum(y, NEG_SLOPE * y)

            o_ref[b, i * c4v:(i + 1) * c4v, :] = y
            state = y                                               # feeds the next branch

        # last quarter of the channels passes through untouched
        o_ref[b, n_branch * c4v:(n_branch + 1) * c4v, :] = \
            x_ref[b, n_branch * c4v:(n_branch + 1) * c4v, :]


def _pick_batch_block(n, cap=8):
    """Largest divisor of n (<= cap) that still leaves >= 4 (else >= 2, else >= 1) grid steps."""
    for min_steps in (4, 2, 1):
        for b in range(min(cap, n), 0, -1):
            if n % b == 0 and n // b >= min_steps:
                return b
    return 1


def mta_pallas(x, adj, gc_weights, conv_w, conv_biases, bn_scales, bn_shifts, *, ksize):
    """MTA forward.  x: (N, C, V, T) float32.  Returns (N, C, V, T) float32."""
    N, C, V, T = x.shape
    Cq = C // PART
    C4V = Cq * V
    n_branch = PART - 1
    pad = ksize // 2

    # ---- trace-time parameter folding (tiny, pure JAX, done in f32) -----------------------------
    Mf_list, shift_list = [], []
    for i in range(n_branch):
        # SimpleGC as one matrix: M[(c,v),(c',w)] = sum_k adj[k,w,v] * Wgc[w,c,k,c']
        M = jnp.einsum('kwv,wokc->ovcw', adj, gc_weights[i]).reshape(C4V, C4V)
        scale_rows = jnp.repeat(bn_scales[i], V)                    # BN scale per output row
        Mf = scale_rows[:, None] * M
        bias_rows = jnp.repeat(conv_biases[i], V)                   # conv bias per input row
        shift_rows = Mf @ bias_rows + jnp.repeat(bn_shifts[i], V)   # conv bias + BN shift folded
        Mf_list.append(Mf)
        shift_list.append(shift_rows)
    Mfold = jnp.stack(Mf_list).astype(jnp.bfloat16)                 # (3, C4V, C4V) bf16 for MXU
    shift = jnp.stack(shift_list)[..., None]                        # (3, C4V, 1)   f32

    # mask-folded depthwise conv weights: wm[j,r,t] = w[r,j] if 0 <= t+j-pad < T else 0
    wrow = jnp.repeat(conv_w, V, axis=0)                            # (C4V, ksize), shared weight
    t_idx = np.arange(T)
    valid = np.stack([((t_idx + j - pad >= 0) & (t_idx + j - pad < T)).astype(np.float32)
                      for j in range(ksize)])                       # (ksize, T)
    wm = wrow.T[:, :, None] * jnp.asarray(valid)[:, None, :]        # (ksize, C4V, T) f32

    x_flat = x.reshape(N, C * V, T)                                 # free reshape, no transpose

    B_blk = _pick_batch_block(N)                                    # samples per grid step
    grid = (N // B_blk,)

    # accurate cost: 1 graph-conv matmul + ksize MAC taps + ~6 elementwise ops per branch/sample
    flops = N * n_branch * (2 * C4V * C4V * T + 2 * ksize * C4V * T + 6 * C4V * T)
    bytes_accessed = (4 * 2 * x_flat.size + 2 * Mfold.size + 4 * (wm.size + shift.size))

    kernel = functools.partial(_mta_kernel, n_branch=n_branch, ksize=ksize,
                               c4v=C4V, b_blk=B_blk, pad=pad, t_len=T)
    out_flat = pl.pallas_call(
        kernel,
        out_shape=jax.ShapeDtypeStruct((N, C * V, T), jnp.float32),
        grid=grid,
        in_specs=[
            pl.BlockSpec((B_blk, C * V, T), lambda n: (n, 0, 0)),       # per-step activation block
            pl.BlockSpec((n_branch, C4V, C4V), lambda n: (0, 0, 0)),    # folded GC matrices (bf16)
            pl.BlockSpec((ksize, C4V, T), lambda n: (0, 0, 0)),         # mask-folded conv weights
            pl.BlockSpec((n_branch, C4V, 1), lambda n: (0, 0, 0)),      # folded shifts
        ],
        out_specs=pl.BlockSpec((B_blk, C * V, T), lambda n: (n, 0, 0)),
        compiler_params=pltpu.CompilerParams(
            dimension_semantics=("parallel",),
            vmem_limit_bytes=32 * 1024 * 1024),
        cost_estimate=pl.CostEstimate(flops=flops, transcendentals=0,
                                      bytes_accessed=bytes_accessed),
    )(x_flat, Mfold, wm, shift)
    return out_flat.reshape(N, C, V, T)                             # free reshape, no transpose


# ----------------------------- pure-JAX reference (mirrors the PyTorch module) -------------------

def mta_reference(x, adj, gc_weights, conv_w, conv_biases, bn_scales, bn_shifts, *, ksize):
    N, C, V, T = x.shape
    Cq = C // PART
    pad = ksize // 2
    xp = jnp.transpose(x, (0, 2, 1, 3)).reshape(N * V, C, T)
    splits = [xp[:, i * Cq:(i + 1) * Cq, :] for i in range(PART)]
    outs = []
    split = None
    for i in range(PART - 1):
        split = splits[0] if i == 0 else split + splits[i]
        spad = jnp.pad(split, ((0, 0), (0, 0), (pad, pad)))
        u = conv_biases[i][None, :, None]
        for j in range(ksize):
            u = u + conv_w[None, :, j:j + 1] * spad[:, :, j:j + T]
        s4 = jnp.transpose(u.reshape(N, V, Cq, T), (0, 2, 1, 3))       # (N, Cq, V, T)
        g = jnp.einsum('kwv,wckq,nqwt->ncvt', adj, gc_weights[i], s4,
                       precision=jax.lax.Precision.HIGHEST)
        y = g * bn_scales[i][None, :, None, None] + bn_shifts[i][None, :, None, None]
        y = jnp.where(y >= 0, y, NEG_SLOPE * y)
        outs.append(y)
        split = jnp.transpose(y, (0, 2, 1, 3)).reshape(N * V, Cq, T)
    outs.append(jnp.transpose(splits[PART - 1].reshape(N, V, Cq, T), (0, 2, 1, 3)))
    return jnp.concatenate(outs, axis=1)


# ----------------------------- main ---------------------------------------------------------------

if __name__ == "__main__":
    key = jax.random.PRNGKey(0)
    keys = jax.random.split(key, 16)

    # N batch, C channels (divisible by 4), V skeleton nodes, T time frames.
    # Chosen so Cq*V = 128 (MXU tile rows) and T = 128 (fully lane-dense last dim).
    N, C, V, T = 2, 64, 8, 128
    K = 3                      # adjacency computation-kernel size (adj: (K, V, V))
    ksize = 5                  # MTA temporal_size
    Cq = C // PART             # 16

    adj = jax.random.normal(keys[0], (K, V, V), jnp.float32) * 0.3

    # Fixed-pattern depthwise conv weight shared by all three branches (as in the PyTorch module)
    conv_w = jnp.zeros((Cq, ksize), jnp.float32)
    conv_w = conv_w.at[Cq // 8:Cq // 4, 0].set(1.0)
    conv_w = conv_w.at[Cq // 4:, 1].set(1.0)
    conv_w = conv_w.at[:Cq // 8, 2].set(1.0)

    gc_weights, conv_biases, bn_scales, bn_shifts = [], [], [], []
    for i in range(PART - 1):
        k0, k1, k2, k3, k4, k5 = jax.random.split(keys[1 + i], 6)
        gc_weights.append(jax.random.normal(k0, (V, Cq, K, Cq), jnp.float32) * 0.1)
        conv_biases.append(0.1 * jax.random.normal(k1, (Cq,), jnp.float32))
        gamma = 1.0 + 0.1 * jax.random.normal(k2, (Cq,), jnp.float32)
        beta = 0.1 * jax.random.normal(k3, (Cq,), jnp.float32)
        mean = 0.1 * jax.random.normal(k4, (Cq,), jnp.float32)
        var = jnp.abs(jax.random.normal(k5, (Cq,), jnp.float32)) + 0.5
        scale = gamma / jnp.sqrt(var + BN_EPS)
        bn_scales.append(scale)
        bn_shifts.append(beta - mean * scale)

    x = jax.random.normal(keys[10], (N, C, V, T), jnp.float32)

    fwd = jax.jit(functools.partial(mta_pallas, ksize=ksize))
    out = jax.block_until_ready(
        fwd(x, adj, gc_weights, conv_w, conv_biases, bn_scales, bn_shifts))
    out_ref = jax.block_until_ready(
        mta_reference(x, adj, gc_weights, conv_w, conv_biases, bn_scales, bn_shifts, ksize=ksize))

    assert out.shape == (N, C, V, T), out.shape
    np.testing.assert_allclose(np.asarray(out), np.asarray(out_ref), rtol=2e-2, atol=2e-2)
    print("KERNEL_OK")
</pallas_src>

<mosaic_0001>
module attributes {stable_mosaic.version = 11 : i64} {
  func.func @_mta_kernel(%arg0: i32, %arg1: memref<1x512x128xf32, #tpu.memory_space<vmem>>, %arg2: memref<3x128x128xbf16, #tpu.memory_space<vmem>>, %arg3: memref<5x128x128xf32, #tpu.memory_space<vmem>>, %arg4: memref<3x128x1xf32, #tpu.memory_space<vmem>>, %arg5: memref<1x512x128xf32, #tpu.memory_space<vmem>>) attributes {dimension_semantics = [#tpu.dimension_semantics<parallel>], iteration_bounds = array<i64: 2>, scalar_prefetch = 0 : i64, scratch_operands = 0 : i64, tpu.core_type = #tpu.core_type<tc>, window_params = [{transform_indices = @transform_0, window_bounds = array<i64: 1, 512, 128>}, {pipeline_mode = #tpu.pipeline_mode<synchronous>, transform_indices = @transform_1, window_bounds = array<i64: 3, 128, 128>}, {pipeline_mode = #tpu.pipeline_mode<synchronous>, transform_indices = @transform_2, window_bounds = array<i64: 5, 128, 128>}, {pipeline_mode = #tpu.pipeline_mode<synchronous>, transform_indices = @transform_3, window_bounds = array<i64: 3, 128, 1>}, {transform_indices = @transform_4, window_bounds = array<i64: 1, 512, 128>}]} {
    %c0 = arith.constant 0 : index
    %c0_0 = arith.constant 0 : index
    %c0_1 = arith.constant 0 : index
    %0 = vector.load %arg1[%c0, %c0_0, %c0_1] : memref<1x512x128xf32, #tpu.memory_space<vmem>>, vector<1x128x128xf32>
    %1 = vector.shape_cast %0 : vector<1x128x128xf32> to vector<128x128xf32>
    %c2 = arith.constant 2 : index
    %c0_2 = arith.constant 0 : index
    %c0_3 = arith.constant 0 : index
    %2 = vector.load %arg3[%c2, %c0_2, %c0_3] : memref<5x128x128xf32, #tpu.memory_space<vmem>>, vector<1x128x128xf32>
    %3 = vector.shape_cast %2 : vector<1x128x128xf32> to vector<128x128xf32>
    %4 = arith.mulf %3, %1 : vector<128x128xf32>
    %c0_4 = arith.constant 0 : index
    %c0_5 = arith.constant 0 : index
    %c0_6 = arith.constant 0 : index
    %5 = vector.load %arg3[%c0_4, %c0_5, %c0_6] : memref<5x128x128xf32, #tpu.memory_space<vmem>>, vector<1x128x128xf32>
    %6 = vector.shape_cast %5 : vector<1x128x128xf32> to vector<128x128xf32>
    %c2_i32 = arith.constant 2 : i32
    %7 = tpu.dynamic_rotate %1 by %c2_i32 dim 1 : vector<128x128xf32>, i32 -> vector<128x128xf32>
    %8 = arith.mulf %6, %7 : vector<128x128xf32>
    %9 = arith.addf %4, %8 : vector<128x128xf32>
    %c1 = arith.constant 1 : index
    %c0_7 = arith.constant 0 : index
    %c0_8 = arith.constant 0 : index
    %10 = vector.load %arg3[%c1, %c0_7, %c0_8] : memref<5x128x128xf32, #tpu.memory_space<vmem>>, vector<1x128x128xf32>
    %11 = vector.shape_cast %10 : vector<1x128x128xf32> to vector<128x128xf32>
    %c1_i32 = arith.constant 1 : i32
    %12 = tpu.dynamic_rotate %1 by %c1_i32 dim 1 : vector<128x128xf32>, i32 -> vector<128x128xf32>
    %13 = arith.mulf %11, %12 : vector<128x128xf32>
    %14 = arith.addf %9, %13 : vector<128x128xf32>
    %c3 = arith.constant 3 : index
    %c0_9 = arith.constant 0 : index
    %c0_10 = arith.constant 0 : index
    %15 = vector.load %arg3[%c3, %c0_9, %c0_10] : memref<5x128x128xf32, #tpu.memory_space<vmem>>, vector<1x128x128xf32>
    %16 = vector.shape_cast %15 : vector<1x128x128xf32> to vector<128x128xf32>
    %c127_i32 = arith.constant 127 : i32
    %17 = tpu.dynamic_rotate %1 by %c127_i32 dim 1 : vector<128x128xf32>, i32 -> vector<128x128xf32>
    %18 = arith.mulf %16, %17 : vector<128x128xf32>
    %19 = arith.addf %14, %18 : vector<128x128xf32>
    %c4 = arith.constant 4 : index
    %c0_11 = arith.constant 0 : index
    %c0_12 = arith.constant 0 : index
    %20 = vector.load %arg3[%c4, %c0_11, %c0_12] : memref<5x128x128xf32, #tpu.memory_space<vmem>>, vector<1x128x128xf32>
    %21 = vector.shape_cast %20 : vector<1x128x128xf32> to vector<128x128xf32>
    %c126_i32 = arith.constant 126 : i32
    %22 = tpu.dynamic_rotate %1 by %c126_i32 dim 1 : vector<128x128xf32>, i32 -> vector<128x128xf32>
    %23 = arith.mulf %21, %22 : vector<128x128xf32>
    %24 = arith.addf %19, %23 : vector<128x128xf32>
    %c0_13 = arith.constant 0 : index
    %c0_14 = arith.constant 0 : index
    %c0_15 = arith.constant 0 : index
    %25 = vector.load %arg2[%c0_13, %c0_14, %c0_15] : memref<3x128x128xbf16, #tpu.memory_space<vmem>>, vector<1x128x128xbf16>
    %26 = vector.shape_cast %25 : vector<1x128x128xbf16> to vector<128x128xbf16>
    %27 = arith.truncf %24 : vector<128x128xf32> to vector<128x128xbf16>
    %cst = arith.constant dense<0.000000e+00> : vector<128x128xf32>
    %28 = tpu.matmul %26, %27, %cst {dimension_numbers = #tpu.dot_dimension_numbers<[1], [0], [0], [1], [0, 0, 1, 1], [], []>} : vector<128x128xbf16>, vector<128x128xbf16>, vector<128x128xf32> -> vector<128x128xf32>
    %c0_16 = arith.constant 0 : index
    %c0_17 = arith.constant 0 : index
    %c0_18 = arith.constant 0 : index
    %29 = vector.load %arg4[%c0_16, %c0_17, %c0_18] : memref<3x128x1xf32, #tpu.memory_space<vmem>>, vector<1x128x1xf32>
    %30 = vector.shape_cast %29 : vector<1x128x1xf32> to vector<128x1xf32>
    %31 = vector.broadcast %30 : vector<128x1xf32> to vector<128x128xf32>
    %32 = arith.addf %28, %31 : vector<128x128xf32>
    %cst_19 = arith.constant 2.000000e-01 : f32
    %33 = vector.broadcast %cst_19 : f32 to vector<128x128xf32>
    %34 = arith.mulf %33, %32 : vector<128x128xf32>
    %35 = arith.maximumf %32, %34 : vector<128x128xf32>
    %c0_20 = arith.constant 0 : index
    %c0_21 = arith.constant 0 : index
    %c0_22 = arith.constant 0 : index
    %36 = vector.load %arg5[%c0_20, %c0_21, %c0_22] : memref<1x512x128xf32, #tpu.memory_space<vmem>>, vector<1x128x128xf32>
    %37 = vector.shape_cast %36 : vector<1x128x128xf32> to vector<128x128xf32>
    %38 = vector.shape_cast %35 : vector<128x128xf32> to vector<1x128x128xf32>
    tpu.vector_store %arg5[%c0_20, %c0_21, %c0_22], %38 {strides = array<i32>} : memref<1x512x128xf32, #tpu.memory_space<vmem>>, vector<1x128x128xf32>,
    %c0_23 = arith.constant 0 : index
    %c128 = arith.constant 128 : index
    %c0_24 = arith.constant 0 : index
    %39 = vector.load %arg1[%c0_23, %c128, %c0_24] : memref<1x512x128xf32, #tpu.memory_space<vmem>>, vector<1x128x128xf32>
    %40 = vector.shape_cast %39 : vector<1x128x128xf32> to vector<128x128xf32>
    %41 = arith.addf %35, %40 : vector<128x128xf32>
    %c2_25 = arith.constant 2 : index
    %c0_26 = arith.constant 0 : index
    %c0_27 = arith.constant 0 : index
    %42 = vector.load %arg3[%c2_25, %c0_26, %c0_27] : memref<5x128x128xf32, #tpu.memory_space<vmem>>, vector<1x128x128xf32>
    %43 = vector.shape_cast %42 : vector<1x128x128xf32> to vector<128x128xf32>
    %44 = arith.mulf %43, %41 : vector<128x128xf32>
    %c0_28 = arith.constant 0 : index
    %c0_29 = arith.constant 0 : index
    %c0_30 = arith.constant 0 : index
    %45 = vector.load %arg3[%c0_28, %c0_29, %c0_30] : memref<5x128x128xf32, #tpu.memory_space<vmem>>, vector<1x128x128xf32>
    %46 = vector.shape_cast %45 : vector<1x128x128xf32> to vector<128x128xf32>
    %c2_i32_31 = arith.constant 2 : i32
    %47 = tpu.dynamic_rotate %41 by %c2_i32_31 dim 1 : vector<128x128xf32>, i32 -> vector<128x128xf32>
    %48 = arith.mulf %46, %47 : vector<128x128xf32>
    %49 = arith.addf %44, %48 : vector<128x128xf32>
    %c1_32 = arith.constant 1 : index
    %c0_33 = arith.constant 0 : index
    %c0_34 = arith.constant 0 : index
    %50 = vector.load %arg3[%c1_32, %c0_33, %c0_34] : memref<5x128x128xf32, #tpu.memory_space<vmem>>, vector<1x128x128xf32>
    %51 = vector.shape_cast %50 : vector<1x128x128xf32> to vector<128x128xf32>
    %c1_i32_35 = arith.constant 1 : i32
    %52 = tpu.dynamic_rotate %41 by %c1_i32_35 dim 1 : vector<128x128xf32>, i32 -> vector<128x128xf32>
    %53 = arith.mulf %51, %52 : vector<128x128xf32>
    %54 = arith.addf %49, %53 : vector<128x128xf32>
    %c3_36 = arith.constant 3 : index
    %c0_37 = arith.constant 0 : index
    %c0_38 = arith.constant 0 : index
    %55 = vector.load %arg3[%c3_36, %c0_37, %c0_38] : memref<5x128x128xf32, #tpu.memory_space<vmem>>, vector<1x128x128xf32>
    %56 = vector.shape_cast %55 : vector<1x128x128xf32> to vector<128x128xf32>
    %c127_i32_39 = arith.constant 127 : i32
    %57 = tpu.dynamic_rotate %41 by %c127_i32_39 dim 1 : vector<128x128xf32>, i32 -> vector<128x128xf32>
    %58 = arith.mulf %56, %57 : vector<128x128xf32>
    %59 = arith.addf %54, %58 : vector<128x128xf32>
    %c4_40 = arith.constant 4 : index
    %c0_41 = arith.constant 0 : index
    %c0_42 = arith.constant 0 : index
    %60 = vector.load %arg3[%c4_40, %c0_41, %c0_42] : memref<5x128x128xf32, #tpu.memory_space<vmem>>, vector<1x128x128xf32>
    %61 = vector.shape_cast %60 : vector<1x128x128xf32> to vector<128x128xf32>
    %c126_i32_43 = arith.constant 126 : i32
    %62 = tpu.dynamic_rotate %41 by %c126_i32_43 dim 1 : vector<128x128xf32>, i32 -> vector<128x128xf32>
    %63 = arith.mulf %61, %62 : vector<128x128xf32>
    %64 = arith.addf %59, %63 : vector<128x128xf32>
    %c1_44 = arith.constant 1 : index
    %c0_45 = arith.constant 0 : index
    %c0_46 = arith.constant 0 : index
    %65 = vector.load %arg2[%c1_44, %c0_45, %c0_46] : memref<3x128x128xbf16, #tpu.memory_space<vmem>>, vector<1x128x128xbf16>
    %66 = vector.shape_cast %65 : vector<1x128x128xbf16> to vector<128x128xbf16>
    %67 = arith.truncf %64 : vector<128x128xf32> to vector<128x128xbf16>
    %cst_47 = arith.constant dense<0.000000e+00> : vector<128x128xf32>
    %68 = tpu.matmul %66, %67, %cst_47 {dimension_numbers = #tpu.dot_dimension_numbers<[1], [0], [0], [1], [0, 0, 1, 1], [], []>} : vector<128x128xbf16>, vector<128x128xbf16>, vector<128x128xf32> -> vector<128x128xf32>
    %c1_48 = arith.constant 1 : index
    %c0_49 = arith.constant 0 : index
    %c0_50 = arith.constant 0 : index
    %69 = vector.load %arg4[%c1_48, %c0_49, %c0_50] : memref<3x128x1xf32, #tpu.memory_space<vmem>>, vector<1x128x1xf32>
    %70 = vector.shape_cast %69 : vector<1x128x1xf32> to vector<128x1xf32>
    %71 = vector.broadcast %70 : vector<128x1xf32> to vector<128x128xf32>
    %72 = arith.addf %68, %71 : vector<128x128xf32>
    %cst_51 = arith.constant 2.000000e-01 : f32
    %73 = vector.broadcast %cst_51 : f32 to vector<128x128xf32>
    %74 = arith.mulf %73, %72 : vector<128x128xf32>
    %75 = arith.maximumf %72, %74 : vector<128x128xf32>
    %c0_52 = arith.constant 0 : index
    %c128_53 = arith.constant 128 : index
    %c0_54 = arith.constant 0 : index
    %76 = vector.load %arg5[%c0_52, %c128_53, %c0_54] : memref<1x512x128xf32, #tpu.memory_space<vmem>>, vector<1x128x128xf32>
    %77 = vector.shape_cast %76 : vector<1x128x128xf32> to vector<128x128xf32>
    %78 = vector.shape_cast %75 : vector<128x128xf32> to vector<1x128x128xf32>
    tpu.vector_store %arg5[%c0_52, %c128_53, %c0_54], %78 {strides = array<i32>} : memref<1x512x128xf32, #tpu.memory_space<vmem>>, vector<1x128x128xf32>,
    %c0_55 = arith.constant 0 : index
    %c256 = arith.constant 256 : index
    %c0_56 = arith.constant 0 : index
    %79 = vector.load %arg1[%c0_55, %c256, %c0_56] : memref<1x512x128xf32, #tpu.memory_space<vmem>>, vector<1x128x128xf32>
    %80 = vector.shape_cast %79 : vector<1x128x128xf32> to vector<128x128xf32>
    %81 = arith.addf %75, %80 : vector<128x128xf32>
    %c2_57 = arith.constant 2 : index
    %c0_58 = arith.constant 0 : index
    %c0_59 = arith.constant 0 : index
    %82 = vector.load %arg3[%c2_57, %c0_58, %c0_59] : memref<5x128x128xf32, #tpu.memory_space<vmem>>, vector<1x128x128xf32>
    %83 = vector.shape_cast %82 : vector<1x128x128xf32> to vector<128x128xf32>
    %84 = arith.mulf %83, %81 : vector<128x128xf32>
    %c0_60 = arith.constant 0 : index
    %c0_61 = arith.constant 0 : index
    %c0_62 = arith.constant 0 : index
    %85 = vector.load %arg3[%c0_60, %c0_61, %c0_62] : memref<5x128x128xf32, #tpu.memory_space<vmem>>, vector<1x128x128xf32>
    %86 = vector.shape_cast %85 : vector<1x128x128xf32> to vector<128x128xf32>
    %c2_i32_63 = arith.constant 2 : i32
    %87 = tpu.dynamic_rotate %81 by %c2_i32_63 dim 1 : vector<128x128xf32>, i32 -> vector<128x128xf32>
    %88 = arith.mulf %86, %87 : vector<128x128xf32>
    %89 = arith.addf %84, %88 : vector<128x128xf32>
    %c1_64 = arith.constant 1 : index
    %c0_65 = arith.constant 0 : index
    %c0_66 = arith.constant 0 : index
    %90 = vector.load %arg3[%c1_64, %c0_65, %c0_66] : memref<5x128x128xf32, #tpu.memory_space<vmem>>, vector<1x128x128xf32>
    %91 = vector.shape_cast %90 : vector<1x128x128xf32> to vector<128x128xf32>
    %c1_i32_67 = arith.constant 1 : i32
    %92 = tpu.dynamic_rotate %81 by %c1_i32_67 dim 1 : vector<128x128xf32>, i32 -> vector<128x128xf32>
    %93 = arith.mulf %91, %92 : vector<128x128xf32>
    %94 = arith.addf %89, %93 : vector<128x128xf32>
    %c3_68 = arith.constant 3 : index
    %c0_69 = arith.constant 0 : index
    %c0_70 = arith.constant 0 : index
    %95 = vector.load %arg3[%c3_68, %c0_69, %c0_70] : memref<5x128x128xf32, #tpu.memory_space<vmem>>, vector<1x128x128xf32>
    %96 = vector.shape_cast %95 : vector<1x128x128xf32> to vector<128x128xf32>
    %c127_i32_71 = arith.constant 127 : i32
    %97 = tpu.dynamic_rotate %81 by %c127_i32_71 dim 1 : vector<128x128xf32>, i32 -> vector<128x128xf32>
    %98 = arith.mulf %96, %97 : vector<128x128xf32>
    %99 = arith.addf %94, %98 : vector<128x128xf32>
    %c4_72 = arith.constant 4 : index
    %c0_73 = arith.constant 0 : index
    %c0_74 = arith.constant 0 : index
    %100 = vector.load %arg3[%c4_72, %c0_73, %c0_74] : memref<5x128x128xf32, #tpu.memory_space<vmem>>, vector<1x128x128xf32>
    %101 = vector.shape_cast %100 : vector<1x128x128xf32> to vector<128x128xf32>
    %c126_i32_75 = arith.constant 126 : i32
    %102 = tpu.dynamic_rotate %81 by %c126_i32_75 dim 1 : vector<128x128xf32>, i32 -> vector<128x128xf32>
    %103 = arith.mulf %101, %102 : vector<128x128xf32>
    %104 = arith.addf %99, %103 : vector<128x128xf32>
    %c2_76 = arith.constant 2 : index
    %c0_77 = arith.constant 0 : index
    %c0_78 = arith.constant 0 : index
    %105 = vector.load %arg2[%c2_76, %c0_77, %c0_78] : memref<3x128x128xbf16, #tpu.memory_space<vmem>>, vector<1x128x128xbf16>
    %106 = vector.shape_cast %105 : vector<1x128x128xbf16> to vector<128x128xbf16>
    %107 = arith.truncf %104 : vector<128x128xf32> to vector<128x128xbf16>
    %cst_79 = arith.constant dense<0.000000e+00> : vector<128x128xf32>
    %108 = tpu.matmul %106, %107, %cst_79 {dimension_numbers = #tpu.dot_dimension_numbers<[1], [0], [0], [1], [0, 0, 1, 1], [], []>} : vector<128x128xbf16>, vector<128x128xbf16>, vector<128x128xf32> -> vector<128x128xf32>
    %c2_80 = arith.constant 2 : index
    %c0_81 = arith.constant 0 : index
    %c0_82 = arith.constant 0 : index
    %109 = vector.load %arg4[%c2_80, %c0_81, %c0_82] : memref<3x128x1xf32, #tpu.memory_space<vmem>>, vector<1x128x1xf32>
    %110 = vector.shape_cast %109 : vector<1x128x1xf32> to vector<128x1xf32>
    %111 = vector.broadcast %110 : vector<128x1xf32> to vector<128x128xf32>
    %112 = arith.addf %108, %111 : vector<128x128xf32>
    %cst_83 = arith.constant 2.000000e-01 : f32
    %113 = vector.broadcast %cst_83 : f32 to vector<128x128xf32>
    %114 = arith.mulf %113, %112 : vector<128x128xf32>
    %115 = arith.maximumf %112, %114 : vector<128x128xf32>
    %c0_84 = arith.constant 0 : index
    %c256_85 = arith.constant 256 : index
    %c0_86 = arith.constant 0 : index
    %116 = vector.load %arg5[%c0_84, %c256_85, %c0_86] : memref<1x512x128xf32, #tpu.memory_space<vmem>>, vector<1x128x128xf32>
    %117 = vector.shape_cast %116 : vector<1x128x128xf32> to vector<128x128xf32>
    %118 = vector.shape_cast %115 : vector<128x128xf32> to vector<1x128x128xf32>
    tpu.vector_store %arg5[%c0_84, %c256_85, %c0_86], %118 {strides = array<i32>} : memref<1x512x128xf32, #tpu.memory_space<vmem>>, vector<1x128x128xf32>,
    %c0_87 = arith.constant 0 : index
    %c384 = arith.constant 384 : index
    %c0_88 = arith.constant 0 : index
    %119 = vector.load %arg1[%c0_87, %c384, %c0_88] : memref<1x512x128xf32, #tpu.memory_space<vmem>>, vector<1x128x128xf32>
    %120 = vector.shape_cast %119 : vector<1x128x128xf32> to vector<128x128xf32>
    %c0_89 = arith.constant 0 : index
    %c384_90 = arith.constant 384 : index
    %c0_91 = arith.constant 0 : index
    %121 = vector.load %arg5[%c0_89, %c384_90, %c0_91] : memref<1x512x128xf32, #tpu.memory_space<vmem>>, vector<1x128x128xf32>
    %122 = vector.shape_cast %121 : vector<1x128x128xf32> to vector<128x128xf32>
    %123 = vector.shape_cast %120 : vector<128x128xf32> to vector<1x128x128xf32>
    tpu.vector_store %arg5[%c0_89, %c384_90, %c0_91], %123 {strides = array<i32>} : memref<1x512x128xf32, #tpu.memory_space<vmem>>, vector<1x128x128xf32>,
    return
  }
  func.func @transform_0(%arg0: i32) -> (i32, i32, i32) {
    %c0_i32 = arith.constant 0 : i32
    %c0_i32_0 = arith.constant 0 : i32
    %c0_i32_1 = arith.constant 0 : i32
    return %arg0, %c0_i32, %c0_i32_0 : i32, i32, i32
  }
  func.func @transform_1(%arg0: i32) -> (i32, i32, i32) {
    %c0_i32 = arith.constant 0 : i32
    %c0_i32_0 = arith.constant 0 : i32
    %c0_i32_1 = arith.constant 0 : i32
    %c0_i32_2 = arith.constant 0 : i32
    return %c0_i32, %c0_i32_0, %c0_i32_1 : i32, i32, i32
  }
  func.func @transform_2(%arg0: i32) -> (i32, i32, i32) {
    %c0_i32 = arith.constant 0 : i32
    %c0_i32_0 = arith.constant 0 : i32
    %c0_i32_1 = arith.constant 0 : i32
    %c0_i32_2 = arith.constant 0 : i32
    return %c0_i32, %c0_i32_0, %c0_i32_1 : i32, i32, i32
  }
  func.func @transform_3(%arg0: i32) -> (i32, i32, i32) {
    %c0_i32 = arith.constant 0 : i32
    %c0_i32_0 = arith.constant 0 : i32
    %c0_i32_1 = arith.constant 0 : i32
    %c0_i32_2 = arith.constant 0 : i32
    return %c0_i32, %c0_i32_0, %c0_i32_1 : i32, i32, i32
  }
  func.func @transform_4(%arg0: i32) -> (i32, i32, i32) {
    %c0_i32 = arith.constant 0 : i32
    %c0_i32_0 = arith.constant 0 : i32
    %c0_i32_1 = arith.constant 0 : i32
    return %arg0, %c0_i32, %c0_i32_0 : i32, i32, i32
  }
}

</mosaic_0001>

<llo_original>
// kernel: mta_pallas.1
$region0: #{mta_pallas.1}
  #allocation0 [shape = 'u32[]', space=smem, size = 0x4, offset = 0x4, fixed_abs, tag = 'smem constant byte address 0x4 - core index']
  #allocation1 [shape = 'u32[144,128]{1,0:T(1,128)}', space=vmem, size = 0x12000, scoped, tag = 'internal scratch']
  %s0 = inlined_call_operand.vmem [shape: f32[2,512,128], index: 0, kind: input, shape index: {}]
  %s1 = inlined_call_operand.vmem [shape: bf16[3,128,128], index: 1, kind: input, shape index: {}]
  %s2 = inlined_call_operand.vmem [shape: f32[5,128,128], index: 2, kind: input, shape index: {}]
  %s3 = inlined_call_operand.vmem [shape: f32[3,128,1], index: 3, kind: input, shape index: {}]
  %s4 = inlined_call_operand.hbm [shape: f32[2,512,128], index: 4, kind: output, shape index: {}]
  %s5 = sld [smem:[#allocation0]]
  $region49: #{mta_pallas.1} parent=0
    _
  %s7 = ssub.s32 1, %s5
  %s8 = scalar_select 0, %s7, %s5
  $region1: #{mta_pallas.1} parent=0
    #allocation2 [shape = 'u8[524288]{0}', space=vmem, size = 0x80000, scoped, tag = 'output window, operand 0']
    #allocation3 [shape = 's32[2]{0}', space=sflag, size = 0x8, scoped, tag = 'scoped memory for mta_pallas.1']
    %9 = vsyncpa [#allocation3], 0
    %s10 = scalar_lea.sflag [#allocation3], 1
    %11 = vsyncpa %s10, 0
    loop: start=0, step=1, limit=4
    $region2: #{mta_pallas.1} parent=1 // loop_pre_header
      _
    $region3: #{mta_pallas.1} parent=1 // loop_header
      %s13 = sphi 0, %s17
      %p14 = scmp.ge.s32.totalorder %s13, 4
      %s23 = sphi 0, %s25
      %s26 = sphi 0, %s23
      %s27 = sphi 0, %s26
      %s43 = sphi 0, %s27
      %s47 = sphi 0, %s47
      %s49 = sphi 0, %s47
      %s50 = sphi 0, %s49
      %s64 = sphi 0, %s50
      %s68 = sphi 0, %s68
      %s70 = sphi 0, %s68
      %s71 = sphi 0, %s70
      %s85 = sphi 0, %s71
      %s89 = sphi 0, %s89
      %s91 = sphi 0, %s89
      %s92 = sphi 0, %s91
      %s106 = sphi 0, %s92
      %s112 = sphi 0, %s114
      %s115 = sphi 0, %s112
      %s116 = sphi 0, %s115
      %s132 = sphi 0, %s116
    $region4: #{mta_pallas.1} parent=1 // loop_header_branch
      %16 = sbr.rel (%p14) target = $region8
    $region5: #{mta_pallas.1} parent=1 // loop_body
      %s18 = ssub.s32 %s13, 1
      %s19 = ssub.s32 %s13, 2
      %s20 = sadd.s32 %s13, 1
      %s21 = ssub.s32 %s13, %s20
      %p22 = scmp.eq.s32.totalorder %s21, 0
      %s24 = sadd.s32 %s23, 1
      %s25 = scalar_select %p22, %s23, %s24
      %p28 = pneg %p22
      %p29 = scmp.eq.s32.totalorder %s13, 1
      %p30 = por %p28, %p29
      %p31 = scmp.ne.s32.totalorder %s23, %s26
      %p32 = scmp.eq.s32.totalorder %s13, 0
      %p33 = por %p31, %p32
      %p34 = scmp.ne.s32.totalorder %s23, %s26
      %p35 = scmp.eq.s32.totalorder %s18, 1
      %p36 = por %p34, %p35
      %p37 = scmp.ne.s32.totalorder %s26, %s27
      %p38 = scmp.eq.s32.totalorder %s18, 0
      %p39 = por %p37, %p38
      %p40 = scmp.ne.s32.totalorder %s26, %s27
      %p41 = scmp.eq.s32.totalorder %s19, 1
      %p42 = por %p40, %p41
      %p44 = scmp.ne.s32.totalorder %s27, %s43
      %p45 = scmp.eq.s32.totalorder %s19, 0
      %p46 = por %p44, %p45
      %s48 = sadd.s32 %s47, 1
      %p51 = scmp.eq.s32.totalorder %s13, 1
      %p52 = scmp.ne.s32.totalorder %s47, %s49
      %p53 = scmp.eq.s32.totalorder %s13, 0
      %p54 = por %p52, %p53
      %p55 = scmp.ne.s32.totalorder %s47, %s49
      %p56 = scmp.eq.s32.totalorder %s18, 1
      %p57 = por %p55, %p56
      %p58 = scmp.ne.s32.totalorder %s49, %s50
      %p59 = scmp.eq.s32.totalorder %s18, 0
      %p60 = por %p58, %p59
      %p61 = scmp.ne.s32.totalorder %s49, %s50
      %p62 = scmp.eq.s32.totalorder %s19, 1
      %p63 = por %p61, %p62
      %p65 = scmp.ne.s32.totalorder %s50, %s64
      %p66 = scmp.eq.s32.totalorder %s19, 0
      %p67 = por %p65, %p66
      %s69 = sadd.s32 %s68, 1
      %p72 = scmp.eq.s32.totalorder %s13, 1
      %p73 = scmp.ne.s32.totalorder %s68, %s70
      %p74 = scmp.eq.s32.totalorder %s13, 0
      %p75 = por %p73, %p74
      %p76 = scmp.ne.s32.totalorder %s68, %s70
      %p77 = scmp.eq.s32.totalorder %s18, 1
      %p78 = por %p76, %p77
      %p79 = scmp.ne.s32.totalorder %s70, %s71
      %p80 = scmp.eq.s32.totalorder %s18, 0
      %p81 = por %p79, %p80
      %p82 = scmp.ne.s32.totalorder %s70, %s71
      %p83 = scmp.eq.s32.totalorder %s19, 1
      %p84 = por %p82, %p83
      %p86 = scmp.ne.s32.totalorder %s71, %s85
      %p87 = scmp.eq.s32.totalorder %s19, 0
      %p88 = por %p86, %p87
      %s90 = sadd.s32 %s89, 1
      %p93 = scmp.eq.s32.totalorder %s13, 1
      %p94 = scmp.ne.s32.totalorder %s89, %s91
      %p95 = scmp.eq.s32.totalorder %s13, 0
      %p96 = por %p94, %p95
      %p97 = scmp.ne.s32.totalorder %s89, %s91
      %p98 = scmp.eq.s32.totalorder %s18, 1
      %p99 = por %p97, %p98
      %p100 = scmp.ne.s32.totalorder %s91, %s92
      %p101 = scmp.eq.s32.totalorder %s18, 0
      %p102 = por %p100, %p101
      %p103 = scmp.ne.s32.totalorder %s91, %s92
      %p104 = scmp.eq.s32.totalorder %s19, 1
      %p105 = por %p103, %p104
      %p107 = scmp.ne.s32.totalorder %s92, %s106
      %p108 = scmp.eq.s32.totalorder %s19, 0
      %p109 = por %p107, %p108
      %s110 = ssub.s32 %s13, %s20
      %p111 = scmp.eq.s32.totalorder %s110, 0
      %s113 = sadd.s32 %s112, 1
      %s114 = scalar_select %p111, %s112, %s113
      %p117 = pneg %p111
      %p118 = scmp.eq.s32.totalorder %s13, 1
      %p119 = por %p117, %p118
      %p120 = scmp.ne.s32.totalorder %s112, %s115
      %p121 = scmp.eq.s32.totalorder %s13, 0
      %p122 = por %p120, %p121
      %p123 = scmp.ne.s32.totalorder %s112, %s115
      %p124 = scmp.eq.s32.totalorder %s18, 1
      %p125 = por %p123, %p124
      %p126 = scmp.ne.s32.totalorder %s115, %s116
      %p127 = scmp.eq.s32.totalorder %s18, 0
      %p128 = por %p126, %p127
      %p129 = scmp.ne.s32.totalorder %s115, %s116
      %p130 = scmp.eq.s32.totalorder %s19, 1
      %p131 = por %p129, %p130
      %p133 = scmp.ne.s32.totalorder %s116, %s132
      %p134 = scmp.eq.s32.totalorder %s19, 0
      %p135 = por %p133, %p134
      %p136 = scmp.le.s32.totalorder 1, %s13
      %p137 = scmp.lt.s32.totalorder %s13, 3
      %p138 = pnand %p136, %p137
      %p139 = pneg %p138
      // Predicated region
      $region9: #{mta_pallas.1} parent=5 // pred_check
        _
      $region10: #{mta_pallas.1} parent=5 // pred_check_branch
        %141 = sbr.rel (%p138) target = $region12
      $region11: #{mta_pallas.1} parent=5 // pred_region
        %s142 = ssub.s32 %s13, 1
        // Predicated region
        $region13: #{mta_pallas.1} parent=11 // pred_check
          %p143 = pneg %p60
        $region14: #{mta_pallas.1} parent=11 // pred_check_branch
          %145 = sbr.rel (%p143) target = $region16
        $region15: #{mta_pallas.1} parent=11 // pred_region
          _
        $region16: #{mta_pallas.1} parent=11 // pred_fallthru
          _
        // Predicated region
        $region17: #{mta_pallas.1} parent=11 // pred_check
          %p146 = pneg %p81
        $region18: #{mta_pallas.1} parent=11 // pred_check_branch
          %148 = sbr.rel (%p146) target = $region20
        $region19: #{mta_pallas.1} parent=11 // pred_region
          _
        $region20: #{mta_pallas.1} parent=11 // pred_fallthru
          _
        // Predicated region
        $region21: #{mta_pallas.1} parent=11 // pred_check
          %p149 = pneg %p102
        $region22: #{mta_pallas.1} parent=11 // pred_check_branch
          %151 = sbr.rel (%p149) target = $region24
        $region23: #{mta_pallas.1} parent=11 // pred_region
          _
        $region24: #{mta_pallas.1} parent=11 // pred_fallthru
          _
      $region12: #{mta_pallas.1} parent=5 // pred_fallthru
        _
      %p152 = scmp.lt.s32.totalorder %s13, 2
      // Predicated region
      $region25: #{mta_pallas.1} parent=5 // pred_check
        %p153 = pneg %p152
      $region26: #{mta_pallas.1} parent=5 // pred_check_branch
        %155 = sbr.rel (%p153) target = $region28
      $region27: #{mta_pallas.1} parent=5 // pred_region
        // Predicated region
        $region29: #{mta_pallas.1} parent=27 // pred_check
          %p156 = pneg %p33
        $region30: #{mta_pallas.1} parent=27 // pred_check_branch
          %158 = sbr.rel (%p156) target = $region32
        $region31: #{mta_pallas.1} parent=27 // pred_region
          %p159 = scmp.lt.s32.totalorder %s13, 1
          %s160 = scalar_select %p159, %s13, 1
          %s161 = smul.addr %s160, 64
          %s162 = smul.addr %s161, 8
          %s163 = scalar_lea.vmem %s0, %s162
        $region32: #{mta_pallas.1} parent=27 // pred_fallthru
          _
      $region28: #{mta_pallas.1} parent=5 // pred_fallthru
        _
      %p164 = scmp.le.s32.totalorder 1, %s13
      %p165 = scmp.lt.s32.totalorder %s13, 3
      %p166 = pnand %p164, %p165
      %p167 = pneg %p166
      // Predicated region
      $region33: #{mta_pallas.1} parent=5 // pred_check
        _
      $region34: #{mta_pallas.1} parent=5 // pred_check_branch
        %169 = sbr.rel (%p166) target = $region36
      $region35: #{mta_pallas.1} parent=5 // pred_region
        %s170 = ssub.s32 %s13, 1
        %p171 = scmp.lt.s32.totalorder %s18, 1
        %s172 = scalar_select %p171, %s18, 1
        %s173 = smul.addr %s172, 64
        %s174 = smul.addr %s173, 8
        %s175 = scalar_lea.vmem %s0, %s174
        %p176 = pneg %p39
        %p177 = pneg %p36
        %p178 = pneg %p60
        %p179 = pneg %p57
        %p180 = pneg %p81
        %p181 = pneg %p78
        %p182 = pneg %p102
        %p183 = pneg %p99
        %p184 = pneg %p128
        %p185 = pneg %p125
        %s186 = sand.u32 %s115, 1
        %s187 = scalar_lea.sflag [#allocation3], %s186
        %s188 = sand.u32 %s115, 1
        %s189 = smul.addr %s188, 512
        %s190 = scalar_lea.vmem [#allocation2], %s189
        %p191 = scmp.lt.s32.totalorder %s18, 1
        %s192 = scalar_select %p191, %s18, 1
        %s193 = smul.addr %s192, 64
        %s194 = smul.addr %s193, 8
        %s195 = scalar_lea.vmem %s0, %s194
        %v197 = vld [vmem:[%s195] sm:$0xff]
        %v198 = vld [vmem:[%s195 + $0x8] sm:$0xff]
        %v199 = vld [vmem:[%s195 + $0x10] sm:$0xff]
        %v200 = vld [vmem:[%s195 + $0x18] sm:$0xff]
        %v201 = vld [vmem:[%s195 + $0x20] sm:$0xff]
        %v202 = vld [vmem:[%s195 + $0x28] sm:$0xff]
        %v203 = vld [vmem:[%s195 + $0x30] sm:$0xff]
        %v204 = vld [vmem:[%s195 + $0x38] sm:$0xff]
        %v205 = vld [vmem:[%s195 + $0x40] sm:$0xff]
        %v206 = vld [vmem:[%s195 + $0x48] sm:$0xff]
        %v207 = vld [vmem:[%s195 + $0x50] sm:$0xff]
        %v208 = vld [vmem:[%s195 + $0x58] sm:$0xff]
        %v209 = vld [vmem:[%s195 + $0x60] sm:$0xff]
        %v210 = vld [vmem:[%s195 + $0x68] sm:$0xff]
        %v211 = vld [vmem:[%s195 + $0x70] sm:$0xff]
        %v212 = vld [vmem:[%s195 + $0x78] sm:$0xff]
        %s213 = scalar_lea.vmem %s2, 256
        %v214 = vld [vmem:[%s213] sm:$0xff]
        %v215 = vld [vmem:[%s213 + $0x8] sm:$0xff]
        %v216 = vld [vmem:[%s213 + $0x10] sm:$0xff]
        %v217 = vld [vmem:[%s213 + $0x18] sm:$0xff]
        %v218 = vld [vmem:[%s213 + $0x20] sm:$0xff]
        %v219 = vld [vmem:[%s213 + $0x28] sm:$0xff]
        %v220 = vld [vmem:[%s213 + $0x30] sm:$0xff]
        %v221 = vld [vmem:[%s213 + $0x38] sm:$0xff]
        %v222 = vld [vmem:[%s213 + $0x40] sm:$0xff]
        %v223 = vld [vmem:[%s213 + $0x48] sm:$0xff]
        %v224 = vld [vmem:[%s213 + $0x50] sm:$0xff]
        %v225 = vld [vmem:[%s213 + $0x58] sm:$0xff]
        %v226 = vld [vmem:[%s213 + $0x60] sm:$0xff]
        %v227 = vld [vmem:[%s213 + $0x68] sm:$0xff]
        %v228 = vld [vmem:[%s213 + $0x70] sm:$0xff]
        %v229 = vld [vmem:[%s213 + $0x78] sm:$0xff]
        %v230 = vmul.f32 %v214, %v197
        %v231 = vmul.f32 %v215, %v198
        %v232 = vmul.f32 %v216, %v199
        %v233 = vmul.f32 %v217, %v200
        %v234 = vmul.f32 %v218, %v201
        %v235 = vmul.f32 %v219, %v202
        %v236 = vmul.f32 %v220, %v203
        %v237 = vmul.f32 %v221, %v204
        %v238 = vmul.f32 %v222, %v205
        %v239 = vmul.f32 %v223, %v206
        %v240 = vmul.f32 %v224, %v207
        %v241 = vmul.f32 %v225, %v208
        %v242 = vmul.f32 %v226, %v209
        %v243 = vmul.f32 %v227, %v210
        %v244 = vmul.f32 %v228, %v211
        %v245 = vmul.f32 %v229, %v212
        %v246 = vld [vmem:[%s2] sm:$0xff]
        %v247 = vld [vmem:[%s2 + $0x8] sm:$0xff]
        %v248 = vld [vmem:[%s2 + $0x10] sm:$0xff]
        %v249 = vld [vmem:[%s2 + $0x18] sm:$0xff]
        %v250 = vld [vmem:[%s2 + $0x20] sm:$0xff]
        %v251 = vld [vmem:[%s2 + $0x28] sm:$0xff]
        %v252 = vld [vmem:[%s2 + $0x30] sm:$0xff]
        %v253 = vld [vmem:[%s2 + $0x38] sm:$0xff]
        %v254 = vld [vmem:[%s2 + $0x40] sm:$0xff]
        %v255 = vld [vmem:[%s2 + $0x48] sm:$0xff]
        %v256 = vld [vmem:[%s2 + $0x50] sm:$0xff]
        %v257 = vld [vmem:[%s2 + $0x58] sm:$0xff]
        %v258 = vld [vmem:[%s2 + $0x60] sm:$0xff]
        %v259 = vld [vmem:[%s2 + $0x68] sm:$0xff]
        %v260 = vld [vmem:[%s2 + $0x70] sm:$0xff]
        %v261 = vld [vmem:[%s2 + $0x78] sm:$0xff]
        %262 = vrot.lane.b32.xlu0 %v197, 2
        %v263 = vpop.permute.xlu0 %262
        %264 = vrot.lane.b32.xlu0 %v198, 2
        %v265 = vpop.permute.xlu0 %264
        %266 = vrot.lane.b32.xlu0 %v199, 2
        %v267 = vpop.permute.xlu0 %266
        %268 = vrot.lane.b32.xlu0 %v200, 2
        %v269 = vpop.permute.xlu0 %268
        %270 = vrot.lane.b32.xlu0 %v201, 2
        %v271 = vpop.permute.xlu0 %270
        %272 = vrot.lane.b32.xlu0 %v202, 2
        %v273 = vpop.permute.xlu0 %272
        %274 = vrot.lane.b32.xlu0 %v203, 2
        %v275 = vpop.permute.xlu0 %274
        %276 = vrot.lane.b32.xlu0 %v204, 2
        %v277 = vpop.permute.xlu0 %276
        %278 = vrot.lane.b32.xlu0 %v205, 2
        %v279 = vpop.permute.xlu0 %278
        %280 = vrot.lane.b32.xlu0 %v206, 2
        %v281 = vpop.permute.xlu0 %280
        %282 = vrot.lane.b32.xlu0 %v207, 2
        %v283 = vpop.permute.xlu0 %282
        %284 = vrot.lane.b32.xlu0 %v208, 2
        %v285 = vpop.permute.xlu0 %284
        %286 = vrot.lane.b32.xlu0 %v209, 2
        %v287 = vpop.permute.xlu0 %286
        %288 = vrot.lane.b32.xlu0 %v210, 2
        %v289 = vpop.permute.xlu0 %288
        %290 = vrot.lane.b32.xlu0 %v211, 2
        %v291 = vpop.permute.xlu0 %290
        %292 = vrot.lane.b32.xlu0 %v212, 2
        %v293 = vpop.permute.xlu0 %292
        %v294 = vmul.f32 %v246, %v263
        %v295 = vmul.f32 %v247, %v265
        %v296 = vmul.f32 %v248, %v267
        %v297 = vmul.f32 %v249, %v269
        %v298 = vmul.f32 %v250, %v271
        %v299 = vmul.f32 %v251, %v273
        %v300 = vmul.f32 %v252, %v275
        %v301 = vmul.f32 %v253, %v277
        %v302 = vmul.f32 %v254, %v279
        %v303 = vmul.f32 %v255, %v281
        %v304 = vmul.f32 %v256, %v283
        %v305 = vmul.f32 %v257, %v285
        %v306 = vmul.f32 %v258, %v287
        %v307 = vmul.f32 %v259, %v289
        %v308 = vmul.f32 %v260, %v291
        %v309 = vmul.f32 %v261, %v293
        %v310 = vadd.f32 %v230, %v294
        %v311 = vadd.f32 %v231, %v295
        %v312 = vadd.f32 %v232, %v296
        %v313 = vadd.f32 %v233, %v297
        %v314 = vadd.f32 %v234, %v298
        %v315 = vadd.f32 %v235, %v299
        %v316 = vadd.f32 %v236, %v300
        %v317 = vadd.f32 %v237, %v301
        %v318 = vadd.f32 %v238, %v302
        %v319 = vadd.f32 %v239, %v303
        %v320 = vadd.f32 %v240, %v304
        %v321 = vadd.f32 %v241, %v305
        %v322 = vadd.f32 %v242, %v306
        %v323 = vadd.f32 %v243, %v307
        %v324 = vadd.f32 %v244, %v308
        %v325 = vadd.f32 %v245, %v309
        %s326 = scalar_lea.vmem %s2, 128
        %v327 = vld [vmem:[%s326] sm:$0xff]
        %v328 = vld [vmem:[%s326 + $0x8] sm:$0xff]
        %v329 = vld [vmem:[%s326 + $0x10] sm:$0xff]
        %v330 = vld [vmem:[%s326 + $0x18] sm:$0xff]
        %v331 = vld [vmem:[%s326 + $0x20] sm:$0xff]
        %v332 = vld [vmem:[%s326 + $0x28] sm:$0xff]
        %v333 = vld [vmem:[%s326 + $0x30] sm:$0xff]
        %v334 = vld [vmem:[%s326 + $0x38] sm:$0xff]
        %v335 = vld [vmem:[%s326 + $0x40] sm:$0xff]
        %v336 = vld [vmem:[%s326 + $0x48] sm:$0xff]
        %v337 = vld [vmem:[%s326 + $0x50] sm:$0xff]
        %v338 = vld [vmem:[%s326 + $0x58] sm:$0xff]
        %v339 = vld [vmem:[%s326 + $0x60] sm:$0xff]
        %v340 = vld [vmem:[%s326 + $0x68] sm:$0xff]
        %v341 = vld [vmem:[%s326 + $0x70] sm:$0xff]
        %v342 = vld [vmem:[%s326 + $0x78] sm:$0xff]
        %343 = vrot.lane.b32.xlu0 %v197, 1
        %v344 = vpop.permute.xlu0 %343
        %345 = vrot.lane.b32.xlu0 %v198, 1
        %v346 = vpop.permute.xlu0 %345
        %347 = vrot.lane.b32.xlu0 %v199, 1
        %v348 = vpop.permute.xlu0 %347
        %349 = vrot.lane.b32.xlu0 %v200, 1
        %v350 = vpop.permute.xlu0 %349
        %351 = vrot.lane.b32.xlu0 %v201, 1
        %v352 = vpop.permute.xlu0 %351
        %353 = vrot.lane.b32.xlu0 %v202, 1
        %v354 = vpop.permute.xlu0 %353
        %355 = vrot.lane.b32.xlu0 %v203, 1
        %v356 = vpop.permute.xlu0 %355
        %357 = vrot.lane.b32.xlu0 %v204, 1
        %v358 = vpop.permute.xlu0 %357
        %359 = vrot.lane.b32.xlu0 %v205, 1
        %v360 = vpop.permute.xlu0 %359
        %361 = vrot.lane.b32.xlu0 %v206, 1
        %v362 = vpop.permute.xlu0 %361
        %363 = vrot.lane.b32.xlu0 %v207, 1
        %v364 = vpop.permute.xlu0 %363
        %365 = vrot.lane.b32.xlu0 %v208, 1
        %v366 = vpop.permute.xlu0 %365
        %367 = vrot.lane.b32.xlu0 %v209, 1
        %v368 = vpop.permute.xlu0 %367
        %369 = vrot.lane.b32.xlu0 %v210, 1
        %v370 = vpop.permute.xlu0 %369
        %371 = vrot.lane.b32.xlu0 %v211, 1
        %v372 = vpop.permute.xlu0 %371
        %373 = vrot.lane.b32.xlu0 %v212, 1
        %v374 = vpop.permute.xlu0 %373
        %v375 = vmul.f32 %v327, %v344
        %v376 = vmul.f32 %v328, %v346
        %v377 = vmul.f32 %v329, %v348
        %v378 = vmul.f32 %v330, %v350
        %v379 = vmul.f32 %v331, %v352
        %v380 = vmul.f32 %v332, %v354
        %v381 = vmul.f32 %v333, %v356
        %v382 = vmul.f32 %v334, %v358
        %v383 = vmul.f32 %v335, %v360
        %v384 = vmul.f32 %v336, %v362
        %v385 = vmul.f32 %v337, %v364
        %v386 = vmul.f32 %v338, %v366
        %v387 = vmul.f32 %v339, %v368
        %v388 = vmul.f32 %v340, %v370
        %v389 = vmul.f32 %v341, %v372
        %v390 = vmul.f32 %v342, %v374
        %v391 = vadd.f32 %v310, %v375
        %v392 = vadd.f32 %v311, %v376
        %v393 = vadd.f32 %v312, %v377
        %v394 = vadd.f32 %v313, %v378
        %v395 = vadd.f32 %v314, %v379
        %v396 = vadd.f32 %v315, %v380
        %v397 = vadd.f32 %v316, %v381
        %v398 = vadd.f32 %v317, %v382
        %v399 = vadd.f32 %v318, %v383
        %v400 = vadd.f32 %v319, %v384
        %v401 = vadd.f32 %v320, %v385
        %v402 = vadd.f32 %v321, %v386
        %v403 = vadd.f32 %v322, %v387
        %v404 = vadd.f32 %v323, %v388
        %v405 = vadd.f32 %v324, %v389
        %v406 = vadd.f32 %v325, %v390
        %s407 = scalar_lea.vmem %s2, 384
        %v408 = vld [vmem:[%s407] sm:$0xff]
        %v409 = vld [vmem:[%s407 + $0x8] sm:$0xff]
        %v410 = vld [vmem:[%s407 + $0x10] sm:$0xff]
        %v411 = vld [vmem:[%s407 + $0x18] sm:$0xff]
        %v412 = vld [vmem:[%s407 + $0x20] sm:$0xff]
        %v413 = vld [vmem:[%s407 + $0x28] sm:$0xff]
        %v414 = vld [vmem:[%s407 + $0x30] sm:$0xff]
        %v415 = vld [vmem:[%s407 + $0x38] sm:$0xff]
        %v416 = vld [vmem:[%s407 + $0x40] sm:$0xff]
        %v417 = vld [vmem:[%s407 + $0x48] sm:$0xff]
        %v418 = vld [vmem:[%s407 + $0x50] sm:$0xff]
        %v419 = vld [vmem:[%s407 + $0x58] sm:$0xff]
        %v420 = vld [vmem:[%s407 + $0x60] sm:$0xff]
        %v421 = vld [vmem:[%s407 + $0x68] sm:$0xff]
        %v422 = vld [vmem:[%s407 + $0x70] sm:$0xff]
        %v423 = vld [vmem:[%s407 + $0x78] sm:$0xff]
        %424 = vrot.lane.b32.xlu0 %v197, 127
        %v425 = vpop.permute.xlu0 %424
        %426 = vrot.lane.b32.xlu0 %v198, 127
        %v427 = vpop.permute.xlu0 %426
        %428 = vrot.lane.b32.xlu0 %v199, 127
        %v429 = vpop.permute.xlu0 %428
        %430 = vrot.lane.b32.xlu0 %v200, 127
        %v431 = vpop.permute.xlu0 %430
        %432 = vrot.lane.b32.xlu0 %v201, 127
        %v433 = vpop.permute.xlu0 %432
        %434 = vrot.lane.b32.xlu0 %v202, 127
        %v435 = vpop.permute.xlu0 %434
        %436 = vrot.lane.b32.xlu0 %v203, 127
        %v437 = vpop.permute.xlu0 %436
        %438 = vrot.lane.b32.xlu0 %v204, 127
        %v439 = vpop.permute.xlu0 %438
        %440 = vrot.lane.b32.xlu0 %v205, 127
        %v441 = vpop.permute.xlu0 %440
        %442 = vrot.lane.b32.xlu0 %v206, 127
        %v443 = vpop.permute.xlu0 %442
        %444 = vrot.lane.b32.xlu0 %v207, 127
        %v445 = vpop.permute.xlu0 %444
        %446 = vrot.lane.b32.xlu0 %v208, 127
        %v447 = vpop.permute.xlu0 %446
        %448 = vrot.lane.b32.xlu0 %v209, 127
        %v449 = vpop.permute.xlu0 %448
        %450 = vrot.lane.b32.xlu0 %v210, 127
        %v451 = vpop.permute.xlu0 %450
        %452 = vrot.lane.b32.xlu0 %v211, 127
        %v453 = vpop.permute.xlu0 %452
        %454 = vrot.lane.b32.xlu0 %v212, 127
        %v455 = vpop.permute.xlu0 %454
        %v456 = vmul.f32 %v408, %v425
        %v457 = vmul.f32 %v409, %v427
        %v458 = vmul.f32 %v410, %v429
        %v459 = vmul.f32 %v411, %v431
        %v460 = vmul.f32 %v412, %v433
        %v461 = vmul.f32 %v413, %v435
        %v462 = vmul.f32 %v414, %v437
        %v463 = vmul.f32 %v415, %v439
        %v464 = vmul.f32 %v416, %v441
        %v465 = vmul.f32 %v417, %v443
        %v466 = vmul.f32 %v418, %v445
        %v467 = vmul.f32 %v419, %v447
        %v468 = vmul.f32 %v420, %v449
        %v469 = vmul.f32 %v421, %v451
        %v470 = vmul.f32 %v422, %v453
        %v471 = vmul.f32 %v423, %v455
        %v472 = vadd.f32 %v391, %v456
        %v473 = vadd.f32 %v392, %v457
        %v474 = vadd.f32 %v393, %v458
        %v475 = vadd.f32 %v394, %v459
        %v476 = vadd.f32 %v395, %v460
        %v477 = vadd.f32 %v396, %v461
        %v478 = vadd.f32 %v397, %v462
        %v479 = vadd.f32 %v398, %v463
        %v480 = vadd.f32 %v399, %v464
        %v481 = vadd.f32 %v400, %v465
        %v482 = vadd.f32 %v401, %v466
        %v483 = vadd.f32 %v402, %v467
        %v484 = vadd.f32 %v403, %v468
        %v485 = vadd.f32 %v404, %v469
        %v486 = vadd.f32 %v405, %v470
        %v487 = vadd.f32 %v406, %v471
        %s488 = scalar_lea.vmem %s2, 512
        %v489 = vld [vmem:[%s488] sm:$0xff]
        %v490 = vld [vmem:[%s488 + $0x8] sm:$0xff]
        %v491 = vld [vmem:[%s488 + $0x10] sm:$0xff]
        %v492 = vld [vmem:[%s488 + $0x18] sm:$0xff]
        %v493 = vld [vmem:[%s488 + $0x20] sm:$0xff]
        %v494 = vld [vmem:[%s488 + $0x28] sm:$0xff]
        %v495 = vld [vmem:[%s488 + $0x30] sm:$0xff]
        %v496 = vld [vmem:[%s488 + $0x38] sm:$0xff]
        %v497 = vld [vmem:[%s488 + $0x40] sm:$0xff]
        %v498 = vld [vmem:[%s488 + $0x48] sm:$0xff]
        %v499 = vld [vmem:[%s488 + $0x50] sm:$0xff]
        %v500 = vld [vmem:[%s488 + $0x58] sm:$0xff]
        %v501 = vld [vmem:[%s488 + $0x60] sm:$0xff]
        %v502 = vld [vmem:[%s488 + $0x68] sm:$0xff]
        %v503 = vld [vmem:[%s488 + $0x70] sm:$0xff]
        %v504 = vld [vmem:[%s488 + $0x78] sm:$0xff]
        %505 = vrot.lane.b32.xlu0 %v197, 126
        %v506 = vpop.permute.xlu0 %505
        %507 = vrot.lane.b32.xlu0 %v198, 126
        %v508 = vpop.permute.xlu0 %507
        %509 = vrot.lane.b32.xlu0 %v199, 126
        %v510 = vpop.permute.xlu0 %509
        %511 = vrot.lane.b32.xlu0 %v200, 126
        %v512 = vpop.permute.xlu0 %511
        %513 = vrot.lane.b32.xlu0 %v201, 126
        %v514 = vpop.permute.xlu0 %513
        %515 = vrot.lane.b32.xlu0 %v202, 126
        %v516 = vpop.permute.xlu0 %515
        %517 = vrot.lane.b32.xlu0 %v203, 126
        %v518 = vpop.permute.xlu0 %517
        %519 = vrot.lane.b32.xlu0 %v204, 126
        %v520 = vpop.permute.xlu0 %519
        %521 = vrot.lane.b32.xlu0 %v205, 126
        %v522 = vpop.permute.xlu0 %521
        %523 = vrot.lane.b32.xlu0 %v206, 126
        %v524 = vpop.permute.xlu0 %523
        %525 = vrot.lane.b32.xlu0 %v207, 126
        %v526 = vpop.permute.xlu0 %525
        %527 = vrot.lane.b32.xlu0 %v208, 126
        %v528 = vpop.permute.xlu0 %527
        %529 = vrot.lane.b32.xlu0 %v209, 126
        %v530 = vpop.permute.xlu0 %529
        %531 = vrot.lane.b32.xlu0 %v210, 126
        %v532 = vpop.permute.xlu0 %531
        %533 = vrot.lane.b32.xlu0 %v211, 126
        %v534 = vpop.permute.xlu0 %533
        %535 = vrot.lane.b32.xlu0 %v212, 126
        %v536 = vpop.permute.xlu0 %535
        %v537 = vmul.f32 %v489, %v506
        %v538 = vmul.f32 %v490, %v508
        %v539 = vmul.f32 %v491, %v510
        %v540 = vmul.f32 %v492, %v512
        %v541 = vmul.f32 %v493, %v514
        %v542 = vmul.f32 %v494, %v516
        %v543 = vmul.f32 %v495, %v518
        %v544 = vmul.f32 %v496, %v520
        %v545 = vmul.f32 %v497, %v522
        %v546 = vmul.f32 %v498, %v524
        %v547 = vmul.f32 %v499, %v526
        %v548 = vmul.f32 %v500, %v528
        %v549 = vmul.f32 %v501, %v530
        %v550 = vmul.f32 %v502, %v532
        %v551 = vmul.f32 %v503, %v534
        %v552 = vmul.f32 %v504, %v536
        %v553 = vadd.f32 %v472, %v537
        %v554 = vadd.f32 %v473, %v538
        %v555 = vadd.f32 %v474, %v539
        %v556 = vadd.f32 %v475, %v540
        %v557 = vadd.f32 %v476, %v541
        %v558 = vadd.f32 %v477, %v542
        %v559 = vadd.f32 %v478, %v543
        %v560 = vadd.f32 %v479, %v544
        %v561 = vadd.f32 %v480, %v545
        %v562 = vadd.f32 %v481, %v546
        %v563 = vadd.f32 %v482, %v547
        %v564 = vadd.f32 %v483, %v548
        %v565 = vadd.f32 %v484, %v549
        %v566 = vadd.f32 %v485, %v550
        %v567 = vadd.f32 %v486, %v551
        %v568 = vadd.f32 %v487, %v552
        %v569 = vld [vmem:[%s1] sm:$0xf]
        %v570 = vld [vmem:[%s1 + $0x4] sm:$0xf]
        %v571 = vld [vmem:[%s1 + $0x8] sm:$0xf]
        %v572 = vld [vmem:[%s1 + $0xc] sm:$0xf]
        %v573 = vld [vmem:[%s1 + $0x10] sm:$0xf]
        %v574 = vld [vmem:[%s1 + $0x14] sm:$0xf]
        %v575 = vld [vmem:[%s1 + $0x18] sm:$0xf]
        %v576 = vld [vmem:[%s1 + $0x1c] sm:$0xf]
        %v577 = vld [vmem:[%s1 + $0x20] sm:$0xf]
        %v578 = vld [vmem:[%s1 + $0x24] sm:$0xf]
        %v579 = vld [vmem:[%s1 + $0x28] sm:$0xf]
        %v580 = vld [vmem:[%s1 + $0x2c] sm:$0xf]
        %v581 = vld [vmem:[%s1 + $0x30] sm:$0xf]
        %v582 = vld [vmem:[%s1 + $0x34] sm:$0xf]
        %v583 = vld [vmem:[%s1 + $0x38] sm:$0xf]
        %v584 = vld [vmem:[%s1 + $0x3c] sm:$0xf]
        %v585 = vpack.c.bf16 %v554, %v553
        %v586 = vpack.c.bf16 %v556, %v555
        %v587 = vpack.c.bf16 %v558, %v557
        %v588 = vpack.c.bf16 %v560, %v559
        %v589 = vpack.c.bf16 %v562, %v561
        %v590 = vpack.c.bf16 %v564, %v563
        %v591 = vpack.c.bf16 %v566, %v565
        %v592 = vpack.c.bf16 %v568, %v567
        %v593 = vld [vmem:[%s3] sm:$0xff]
        %v594 = vld [vmem:[%s3 + $0x8] sm:$0xff]
        %v595 = vld [vmem:[%s3 + $0x10] sm:$0xff]
        %v596 = vld [vmem:[%s3 + $0x18] sm:$0xff]
        %v597 = vld [vmem:[%s3 + $0x20] sm:$0xff]
        %v598 = vld [vmem:[%s3 + $0x28] sm:$0xff]
        %v599 = vld [vmem:[%s3 + $0x30] sm:$0xff]
        %v600 = vld [vmem:[%s3 + $0x38] sm:$0xff]
        %v601 = vld [vmem:[%s3 + $0x40] sm:$0xff]
        %v602 = vld [vmem:[%s3 + $0x48] sm:$0xff]
        %v603 = vld [vmem:[%s3 + $0x50] sm:$0xff]
        %v604 = vld [vmem:[%s3 + $0x58] sm:$0xff]
        %v605 = vld [vmem:[%s3 + $0x60] sm:$0xff]
        %v606 = vld [vmem:[%s3 + $0x68] sm:$0xff]
        %v607 = vld [vmem:[%s3 + $0x70] sm:$0xff]
        %v608 = vld [vmem:[%s3 + $0x78] sm:$0xff]
        %610 = vset.pattern.permute.xlu0 0
        %611 = vperm.xlu0 %610, %v593
        %v612 = vpop.permute.xlu0 %611
        %615 = vset.pattern.permute.xlu0 0
        %616 = vperm.xlu0 %615, %v594
        %v617 = vpop.permute.xlu0 %616
        %620 = vset.pattern.permute.xlu0 0
        %621 = vperm.xlu0 %620, %v595
        %v622 = vpop.permute.xlu0 %621
        %625 = vset.pattern.permute.xlu0 0
        %626 = vperm.xlu0 %625, %v596
        %v627 = vpop.permute.xlu0 %626
        %630 = vset.pattern.permute.xlu0 0
        %631 = vperm.xlu0 %630, %v597
        %v632 = vpop.permute.xlu0 %631
        %635 = vset.pattern.permute.xlu0 0
        %636 = vperm.xlu0 %635, %v598
        %v637 = vpop.permute.xlu0 %636
        %640 = vset.pattern.permute.xlu0 0
        %641 = vperm.xlu0 %640, %v599
        %v642 = vpop.permute.xlu0 %641
        %645 = vset.pattern.permute.xlu0 0
        %646 = vperm.xlu0 %645, %v600
        %v647 = vpop.permute.xlu0 %646
        %650 = vset.pattern.permute.xlu0 0
        %651 = vperm.xlu0 %650, %v601
        %v652 = vpop.permute.xlu0 %651
        %655 = vset.pattern.permute.xlu0 0
        %656 = vperm.xlu0 %655, %v602
        %v657 = vpop.permute.xlu0 %656
        %660 = vset.pattern.permute.xlu0 0
        %661 = vperm.xlu0 %660, %v603
        %v662 = vpop.permute.xlu0 %661
        %665 = vset.pattern.permute.xlu0 0
        %666 = vperm.xlu0 %665, %v604
        %v667 = vpop.permute.xlu0 %666
        %670 = vset.pattern.permute.xlu0 0
        %671 = vperm.xlu0 %670, %v605
        %v672 = vpop.permute.xlu0 %671
        %675 = vset.pattern.permute.xlu0 0
        %676 = vperm.xlu0 %675, %v606
        %v677 = vpop.permute.xlu0 %676
        %680 = vset.pattern.permute.xlu0 0
        %681 = vperm.xlu0 %680, %v607
        %v682 = vpop.permute.xlu0 %681
        %685 = vset.pattern.permute.xlu0 0
        %686 = vperm.xlu0 %685, %v608
        %v687 = vpop.permute.xlu0 %686
        %v705 = vunpack.c.l.b16 %v569
        %v706 = vunpack.c.l.b16 %v570
        %v707 = vunpack.c.l.b16 %v571
        %v708 = vunpack.c.l.b16 %v572
        %v709 = vunpack.c.l.b16 %v573
        %v710 = vunpack.c.l.b16 %v574
        %v711 = vunpack.c.l.b16 %v575
        %v712 = vunpack.c.l.b16 %v576
        %v713 = vunpack.c.l.b16 %v577
        %v714 = vunpack.c.l.b16 %v578
        %v715 = vunpack.c.l.b16 %v579
        %v716 = vunpack.c.l.b16 %v580
        %v717 = vunpack.c.l.b16 %v581
        %v718 = vunpack.c.l.b16 %v582
        %v719 = vunpack.c.l.b16 %v583
        %v720 = vunpack.c.l.b16 %v584
        %v721 = vpack.c.b16 %v706, %v705
        %v722 = vpack.c.b16 %v708, %v707
        %v723 = vpack.c.b16 %v710, %v709
        %v724 = vpack.c.b16 %v712, %v711
        %v725 = vpack.c.b16 %v714, %v713
        %v726 = vpack.c.b16 %v716, %v715
        %v727 = vpack.c.b16 %v718, %v717
        %v728 = vpack.c.b16 %v720, %v719
        %737 = vmatprep.subr.bf16.mxu0 0
        %738 = vmatpush1.bf16.msra.mxu0 %v585
        %739 = vmatprep.subr.bf16.mxu0 0
        %740 = vmatpush1.bf16.msra.mxu0 %v586
        %741 = vmatprep.subr.bf16.mxu0 0
        %742 = vmatpush1.bf16.msra.mxu0 %v587
        %743 = vmatprep.subr.bf16.mxu0 0
        %744 = vmatpush1.bf16.msra.mxu0 %v588
        %745 = vmatprep.subr.bf16.mxu0 0
        %746 = vmatpush1.bf16.msra.mxu0 %v589
        %747 = vmatprep.subr.bf16.mxu0 0
        %748 = vmatpush1.bf16.msra.mxu0 %v590
        %749 = vmatprep.subr.bf16.mxu0 0
        %750 = vmatpush1.bf16.msra.mxu0 %v591
        %751 = vmatprep.subr.bf16.mxu0 0
        %752 = vmatpush1.bf16.msra.mxu0 %v592
        %753 = vmatprep.subr.bf16.mxu0 0
        %754 = vmatpush1.bf16.msra.mxu0 0
        %755 = vmatprep.subr.bf16.mxu0 0
        %756 = vmatpush1.bf16.msra.mxu0 0
        %757 = vmatprep.subr.bf16.mxu0 0
        %758 = vmatpush1.bf16.msra.mxu0 0
        %759 = vmatprep.subr.bf16.mxu0 0
        %760 = vmatpush1.bf16.msra.mxu0 0
        %761 = vmatprep.subr.bf16.mxu0 0
        %762 = vmatpush1.bf16.msra.mxu0 0
        %763 = vmatprep.subr.bf16.mxu0 0
        %764 = vmatpush1.bf16.msra.mxu0 0
        %765 = vmatprep.subr.bf16.mxu0 0
        %766 = vmatpush1.bf16.msra.mxu0 0
        %767 = vmatprep.subr.bf16.mxu0 0
        %768 = vmatpush1.bf16.msra.mxu0 0
        %769 = vmatprep.mubr.bf16.mxu0 0
        %770 = vmatmul.mubr.bf16.gmra.mrb[0].mxu0 %v721
        %v771 = vpop.f32.mrb[0].mxu0
        %v772 = vadd.f32 %v612, %v771
        %v773 = vpop.f32.mrb[0].mxu0
        %v774 = vpop.f32.mrb[0].mxu0
        %v775 = vadd.f32 %v617, %v774
        %v776 = vpop.f32.mrb[0].mxu0
        %777 = vmatprep.mubr.bf16.mxu0 0
        %778 = vmatmul.mubr.bf16.gmra.mrb[0].mxu0 %v722
        %v779 = vpop.f32.mrb[0].mxu0
        %v780 = vadd.f32 %v622, %v779
        %v781 = vpop.f32.mrb[0].mxu0
        %v782 = vpop.f32.mrb[0].mxu0
        %v783 = vadd.f32 %v627, %v782
        %v784 = vpop.f32.mrb[0].mxu0
        %785 = vmatprep.mubr.bf16.mxu0 0
        %786 = vmatmul.mubr.bf16.gmra.mrb[0].mxu0 %v723
        %v787 = vpop.f32.mrb[0].mxu0
        %v788 = vadd.f32 %v632, %v787
        %v789 = vpop.f32.mrb[0].mxu0
        %v790 = vpop.f32.mrb[0].mxu0
        %v791 = vadd.f32 %v637, %v790
        %v792 = vpop.f32.mrb[0].mxu0
        %793 = vmatprep.mubr.bf16.mxu0 0
        %794 = vmatmul.mubr.bf16.gmra.mrb[0].mxu0 %v724
        %v795 = vpop.f32.mrb[0].mxu0
        %v796 = vadd.f32 %v642, %v795
        %v797 = vpop.f32.mrb[0].mxu0
        %v798 = vpop.f32.mrb[0].mxu0
        %v799 = vadd.f32 %v647, %v798
        %v800 = vpop.f32.mrb[0].mxu0
        %801 = vmatprep.mubr.bf16.mxu0 0
        %802 = vmatmul.mubr.bf16.gmra.mrb[0].mxu0 %v725
        %v803 = vpop.f32.mrb[0].mxu0
        %v804 = vadd.f32 %v652, %v803
        %v805 = vpop.f32.mrb[0].mxu0
        %v806 = vpop.f32.mrb[0].mxu0
        %v807 = vadd.f32 %v657, %v806
        %v808 = vpop.f32.mrb[0].mxu0
        %809 = vmatprep.mubr.bf16.mxu0 0
        %810 = vmatmul.mubr.bf16.gmra.mrb[0].mxu0 %v726
        %v811 = vpop.f32.mrb[0].mxu0
        %v812 = vadd.f32 %v662, %v811
        %v813 = vpop.f32.mrb[0].mxu0
        %v814 = vpop.f32.mrb[0].mxu0
        %v815 = vadd.f32 %v667, %v814
        %v816 = vpop.f32.mrb[0].mxu0
        %817 = vmatprep.mubr.bf16.mxu0 0
        %818 = vmatmul.mubr.bf16.gmra.mrb[0].mxu0 %v727
        %v819 = vpop.f32.mrb[0].mxu0
        %v820 = vadd.f32 %v672, %v819
        %v821 = vpop.f32.mrb[0].mxu0
        %v822 = vpop.f32.mrb[0].mxu0
        %v823 = vadd.f32 %v677, %v822
        %v824 = vpop.f32.mrb[0].mxu0
        %825 = vmatprep.mubr.bf16.mxu0 0
        %826 = vmatmul.mubr.bf16.gmra.mrb[0].mxu0 %v728
        %v827 = vpop.f32.mrb[0].mxu0
        %v828 = vadd.f32 %v682, %v827
        %v829 = vpop.f32.mrb[0].mxu0
        %v830 = vpop.f32.mrb[0].mxu0
        %v831 = vadd.f32 %v687, %v830
        %v832 = vpop.f32.mrb[0].mxu0
        %833 = vdwg.mxu0
        %v834 = vmul.f32 %v772, 0.2
        %v835 = vmul.f32 %v775, 0.2
        %v836 = vmul.f32 %v780, 0.2
        %v837 = vmul.f32 %v783, 0.2
        %v838 = vmul.f32 %v788, 0.2
        %v839 = vmul.f32 %v791, 0.2
        %v840 = vmul.f32 %v796, 0.2
        %v841 = vmul.f32 %v799, 0.2
        %v842 = vmul.f32 %v804, 0.2
        %v843 = vmul.f32 %v807, 0.2
        %v844 = vmul.f32 %v812, 0.2
        %v845 = vmul.f32 %v815, 0.2
        %v846 = vmul.f32 %v820, 0.2
        %v847 = vmul.f32 %v823, 0.2
        %v848 = vmul.f32 %v828, 0.2
        %v849 = vmul.f32 %v831, 0.2
        %v850 = vmax.f32 %v772, %v834
        %v851 = vmax.f32 %v775, %v835
        %v852 = vmax.f32 %v780, %v836
        %v853 = vmax.f32 %v783, %v837
        %v854 = vmax.f32 %v788, %v838
        %v855 = vmax.f32 %v791, %v839
        %v856 = vmax.f32 %v796, %v840
        %v857 = vmax.f32 %v799, %v841
        %v858 = vmax.f32 %v804, %v842
        %v859 = vmax.f32 %v807, %v843
        %v860 = vmax.f32 %v812, %v844
        %v861 = vmax.f32 %v815, %v845
        %v862 = vmax.f32 %v820, %v846
        %v863 = vmax.f32 %v823, %v847
        %v864 = vmax.f32 %v828, %v848
        %v865 = vmax.f32 %v831, %v849
        %866 = vst [vmem:[%s190] sm:$0xff] %v850
        %867 = vst [vmem:[%s190 + $0x8] sm:$0xff] %v851
        %868 = vst [vmem:[%s190 + $0x10] sm:$0xff] %v852
        %869 = vst [vmem:[%s190 + $0x18] sm:$0xff] %v853
        %870 = vst [vmem:[%s190 + $0x20] sm:$0xff] %v854
        %871 = vst [vmem:[%s190 + $0x28] sm:$0xff] %v855
        %872 = vst [vmem:[%s190 + $0x30] sm:$0xff] %v856
        %873 = vst [vmem:[%s190 + $0x38] sm:$0xff] %v857
        %874 = vst [vmem:[%s190 + $0x40] sm:$0xff] %v858
        %875 = vst [vmem:[%s190 + $0x48] sm:$0xff] %v859
        %876 = vst [vmem:[%s190 + $0x50] sm:$0xff] %v860
        %877 = vst [vmem:[%s190 + $0x58] sm:$0xff] %v861
        %878 = vst [vmem:[%s190 + $0x60] sm:$0xff] %v862
        %879 = vst [vmem:[%s190 + $0x68] sm:$0xff] %v863
        %880 = vst [vmem:[%s190 + $0x70] sm:$0xff] %v864
        %881 = vst [vmem:[%s190 + $0x78] sm:$0xff] %v865
        %v882 = vld [vmem:[%s195 + $0x80] sm:$0xff]
        %v883 = vld [vmem:[%s195 + $0x88] sm:$0xff]
        %v884 = vld [vmem:[%s195 + $0x90] sm:$0xff]
        %v885 = vld [vmem:[%s195 + $0x98] sm:$0xff]
        %v886 = vld [vmem:[%s195 + $0xa0] sm:$0xff]
        %v887 = vld [vmem:[%s195 + $0xa8] sm:$0xff]
        %v888 = vld [vmem:[%s195 + $0xb0] sm:$0xff]
        %v889 = vld [vmem:[%s195 + $0xb8] sm:$0xff]
        %v890 = vld [vmem:[%s195 + $0xc0] sm:$0xff]
        %v891 = vld [vmem:[%s195 + $0xc8] sm:$0xff]
        %v892 = vld [vmem:[%s195 + $0xd0] sm:$0xff]
        %v893 = vld [vmem:[%s195 + $0xd8] sm:$0xff]
        %v894 = vld [vmem:[%s195 + $0xe0] sm:$0xff]
        %v895 = vld [vmem:[%s195 + $0xe8] sm:$0xff]
        %v896 = vld [vmem:[%s195 + $0xf0] sm:$0xff]
        %v897 = vld [vmem:[%s195 + $0xf8] sm:$0xff]
        %v898 = vadd.f32 %v850, %v882
        %v899 = vadd.f32 %v851, %v883
        %v900 = vadd.f32 %v852, %v884
        %v901 = vadd.f32 %v853, %v885
        %v902 = vadd.f32 %v854, %v886
        %v903 = vadd.f32 %v855, %v887
        %v904 = vadd.f32 %v856, %v888
        %v905 = vadd.f32 %v857, %v889
        %v906 = vadd.f32 %v858, %v890
        %v907 = vadd.f32 %v859, %v891
        %v908 = vadd.f32 %v860, %v892
        %v909 = vadd.f32 %v861, %v893
        %v910 = vadd.f32 %v862, %v894
        %v911 = vadd.f32 %v863, %v895
        %v912 = vadd.f32 %v864, %v896
        %v913 = vadd.f32 %v865, %v897
        %v914 = vld [vmem:[%s213] sm:$0xff]
        %v915 = vld [vmem:[%s213 + $0x8] sm:$0xff]
        %v916 = vld [vmem:[%s213 + $0x10] sm:$0xff]
        %v917 = vld [vmem:[%s213 + $0x18] sm:$0xff]
        %v918 = vld [vmem:[%s213 + $0x20] sm:$0xff]
        %v919 = vld [vmem:[%s213 + $0x28] sm:$0xff]
        %v920 = vld [vmem:[%s213 + $0x30] sm:$0xff]
        %v921 = vld [vmem:[%s213 + $0x38] sm:$0xff]
        %v922 = vld [vmem:[%s213 + $0x40] sm:$0xff]
        %v923 = vld [vmem:[%s213 + $0x48] sm:$0xff]
        %v924 = vld [vmem:[%s213 + $0x50] sm:$0xff]
        %v925 = vld [vmem:[%s213 + $0x58] sm:$0xff]
        %v926 = vld [vmem:[%s213 + $0x60] sm:$0xff]
        %v927 = vld [vmem:[%s213 + $0x68] sm:$0xff]
        %v928 = vld [vmem:[%s213 + $0x70] sm:$0xff]
        %v929 = vld [vmem:[%s213 + $0x78] sm:$0xff]
        %v930 = vmul.f32 %v914, %v898
        %v931 = vmul.f32 %v915, %v899
        %v932 = vmul.f32 %v916, %v900
        %v933 = vmul.f32 %v917, %v901
        %v934 = vmul.f32 %v918, %v902
        %v935 = vmul.f32 %v919, %v903
        %v936 = vmul.f32 %v920, %v904
        %v937 = vmul.f32 %v921, %v905
        %v938 = vmul.f32 %v922, %v906
        %v939 = vmul.f32 %v923, %v907
        %v940 = vmul.f32 %v924, %v908
        %v941 = vmul.f32 %v925, %v909
        %v942 = vmul.f32 %v926, %v910
        %v943 = vmul.f32 %v927, %v911
        %v944 = vmul.f32 %v928, %v912
        %v945 = vmul.f32 %v929, %v913
        %v946 = vld [vmem:[%s2] sm:$0xff]
        %v947 = vld [vmem:[%s2 + $0x8] sm:$0xff]
        %v948 = vld [vmem:[%s2 + $0x10] sm:$0xff]
        %v949 = vld [vmem:[%s2 + $0x18] sm:$0xff]
        %v950 = vld [vmem:[%s2 + $0x20] sm:$0xff]
        %v951 = vld [vmem:[%s2 + $0x28] sm:$0xff]
        %v952 = vld [vmem:[%s2 + $0x30] sm:$0xff]
        %v953 = vld [vmem:[%s2 + $0x38] sm:$0xff]
        %v954 = vld [vmem:[%s2 + $0x40] sm:$0xff]
        %v955 = vld [vmem:[%s2 + $0x48] sm:$0xff]
        %v956 = vld [vmem:[%s2 + $0x50] sm:$0xff]
        %v957 = vld [vmem:[%s2 + $0x58] sm:$0xff]
        %v958 = vld [vmem:[%s2 + $0x60] sm:$0xff]
        %v959 = vld [vmem:[%s2 + $0x68] sm:$0xff]
        %v960 = vld [vmem:[%s2 + $0x70] sm:$0xff]
        %v961 = vld [vmem:[%s2 + $0x78] sm:$0xff]
        %962 = vrot.lane.b32.xlu0 %v898, 2
        %v963 = vpop.permute.xlu0 %962
        %964 = vrot.lane.b32.xlu0 %v899, 2
        %v965 = vpop.permute.xlu0 %964
        %966 = vrot.lane.b32.xlu0 %v900, 2
        %v967 = vpop.permute.xlu0 %966
        %968 = vrot.lane.b32.xlu0 %v901, 2
        %v969 = vpop.permute.xlu0 %968
        %970 = vrot.lane.b32.xlu0 %v902, 2
        %v971 = vpop.permute.xlu0 %970
        %972 = vrot.lane.b32.xlu0 %v903, 2
        %v973 = vpop.permute.xlu0 %972
        %974 = vrot.lane.b32.xlu0 %v904, 2
        %v975 = vpop.permute.xlu0 %974
        %976 = vrot.lane.b32.xlu0 %v905, 2
        %v977 = vpop.permute.xlu0 %976
        %978 = vrot.lane.b32.xlu0 %v906, 2
        %v979 = vpop.permute.xlu0 %978
        %980 = vrot.lane.b32.xlu0 %v907, 2
        %v981 = vpop.permute.xlu0 %980
        %982 = vrot.lane.b32.xlu0 %v908, 2
        %v983 = vpop.permute.xlu0 %982
        %984 = vrot.lane.b32.xlu0 %v909, 2
        %v985 = vpop.permute.xlu0 %984
        %986 = vrot.lane.b32.xlu0 %v910, 2
        %v987 = vpop.permute.xlu0 %986
        %988 = vrot.lane.b32.xlu0 %v911, 2
        %v989 = vpop.permute.xlu0 %988
        %990 = vrot.lane.b32.xlu0 %v912, 2
        %v991 = vpop.permute.xlu0 %990
        %992 = vrot.lane.b32.xlu0 %v913, 2
        %v993 = vpop.permute.xlu0 %992
        %v994 = vmul.f32 %v946, %v963
        %v995 = vmul.f32 %v947, %v965
        %v996 = vmul.f32 %v948, %v967
        %v997 = vmul.f32 %v949, %v969
        %v998 = vmul.f32 %v950, %v971
        %v999 = vmul.f32 %v951, %v973
        %v1000 = vmul.f32 %v952, %v975
        %v1001 = vmul.f32 %v953, %v977
        %v1002 = vmul.f32 %v954, %v979
        %v1003 = vmul.f32 %v955, %v981
        %v1004 = vmul.f32 %v956, %v983
        %v1005 = vmul.f32 %v957, %v985
        %v1006 = vmul.f32 %v958, %v987
        %v1007 = vmul.f32 %v959, %v989
        %v1008 = vmul.f32 %v960, %v991
        %v1009 = vmul.f32 %v961, %v993
        %v1010 = vadd.f32 %v930, %v994
        %v1011 = vadd.f32 %v931, %v995
        %v1012 = vadd.f32 %v932, %v996
        %v1013 = vadd.f32 %v933, %v997
        %v1014 = vadd.f32 %v934, %v998
        %v1015 = vadd.f32 %v935, %v999
        %v1016 = vadd.f32 %v936, %v1000
        %v1017 = vadd.f32 %v937, %v1001
        %v1018 = vadd.f32 %v938, %v1002
        %v1019 = vadd.f32 %v939, %v1003
        %v1020 = vadd.f32 %v940, %v1004
        %v1021 = vadd.f32 %v941, %v1005
        %v1022 = vadd.f32 %v942, %v1006
        %v1023 = vadd.f32 %v943, %v1007
        %v1024 = vadd.f32 %v944, %v1008
        %v1025 = vadd.f32 %v945, %v1009
        %v1026 = vld [vmem:[%s326] sm:$0xff]
        %v1027 = vld [vmem:[%s326 + $0x8] sm:$0xff]
        %v1028 = vld [vmem:[%s326 + $0x10] sm:$0xff]
        %v1029 = vld [vmem:[%s326 + $0x18] sm:$0xff]
        %v1030 = vld [vmem:[%s326 + $0x20] sm:$0xff]
        %v1031 = vld [vmem:[%s326 + $0x28] sm:$0xff]
        %v1032 = vld [vmem:[%s326 + $0x30] sm:$0xff]
        %v1033 = vld [vmem:[%s326 + $0x38] sm:$0xff]
        %v1034 = vld [vmem:[%s326 + $0x40] sm:$0xff]
        %v1035 = vld [vmem:[%s326 + $0x48] sm:$0xff]
        %v1036 = vld [vmem:[%s326 + $0x50] sm:$0xff]
        %v1037 = vld [vmem:[%s326 + $0x58] sm:$0xff]
        %v1038 = vld [vmem:[%s326 + $0x60] sm:$0xff]
        %v1039 = vld [vmem:[%s326 + $0x68] sm:$0xff]
        %v1040 = vld [vmem:[%s326 + $0x70] sm:$0xff]
        %v1041 = vld [vmem:[%s326 + $0x78] sm:$0xff]
        %1042 = vrot.lane.b32.xlu0 %v898, 1
        %v1043 = vpop.permute.xlu0 %1042
        %1044 = vrot.lane.b32.xlu0 %v899, 1
        %v1045 = vpop.permute.xlu0 %1044
        %1046 = vrot.lane.b32.xlu0 %v900, 1
        %v1047 = vpop.permute.xlu0 %1046
        %1048 = vrot.lane.b32.xlu0 %v901, 1
        %v1049 = vpop.permute.xlu0 %1048
        %1050 = vrot.lane.b32.xlu0 %v902, 1
        %v1051 = vpop.permute.xlu0 %1050
        %1052 = vrot.lane.b32.xlu0 %v903, 1
        %v1053 = vpop.permute.xlu0 %1052
        %1054 = vrot.lane.b32.xlu0 %v904, 1
        %v1055 = vpop.permute.xlu0 %1054
        %1056 = vrot.lane.b32.xlu0 %v905, 1
        %v1057 = vpop.permute.xlu0 %1056
        %1058 = vrot.lane.b32.xlu0 %v906, 1
        %v1059 = vpop.permute.xlu0 %1058
        %1060 = vrot.lane.b32.xlu0 %v907, 1
        %v1061 = vpop.permute.xlu0 %1060
        %1062 = vrot.lane.b32.xlu0 %v908, 1
        %v1063 = vpop.permute.xlu0 %1062
        %1064 = vrot.lane.b32.xlu0 %v909, 1
        %v1065 = vpop.permute.xlu0 %1064
        %1066 = vrot.lane.b32.xlu0 %v910, 1
        %v1067 = vpop.permute.xlu0 %1066
        %1068 = vrot.lane.b32.xlu0 %v911, 1
        %v1069 = vpop.permute.xlu0 %1068
        %1070 = vrot.lane.b32.xlu0 %v912, 1
        %v1071 = vpop.permute.xlu0 %1070
        %1072 = vrot.lane.b32.xlu0 %v913, 1
        %v1073 = vpop.permute.xlu0 %1072
        %v1074 = vmul.f32 %v1026, %v1043
        %v1075 = vmul.f32 %v1027, %v1045
        %v1076 = vmul.f32 %v1028, %v1047
        %v1077 = vmul.f32 %v1029, %v1049
        %v1078 = vmul.f32 %v1030, %v1051
        %v1079 = vmul.f32 %v1031, %v1053
        %v1080 = vmul.f32 %v1032, %v1055
        %v1081 = vmul.f32 %v1033, %v1057
        %v1082 = vmul.f32 %v1034, %v1059
        %v1083 = vmul.f32 %v1035, %v1061
        %v1084 = vmul.f32 %v1036, %v1063
        %v1085 = vmul.f32 %v1037, %v1065
        %v1086 = vmul.f32 %v1038, %v1067
        %v1087 = vmul.f32 %v1039, %v1069
        %v1088 = vmul.f32 %v1040, %v1071
        %v1089 = vmul.f32 %v1041, %v1073
        %v1090 = vadd.f32 %v1010, %v1074
        %v1091 = vadd.f32 %v1011, %v1075
        %v1092 = vadd.f32 %v1012, %v1076
        %v1093 = vadd.f32 %v1013, %v1077
        %v1094 = vadd.f32 %v1014, %v1078
        %v1095 = vadd.f32 %v1015, %v1079
        %v1096 = vadd.f32 %v1016, %v1080
        %v1097 = vadd.f32 %v1017, %v1081
        %v1098 = vadd.f32 %v1018, %v1082
        %v1099 = vadd.f32 %v1019, %v1083
        %v1100 = vadd.f32 %v1020, %v1084
        %v1101 = vadd.f32 %v1021, %v1085
        %v1102 = vadd.f32 %v1022, %v1086
        %v1103 = vadd.f32 %v1023, %v1087
        %v1104 = vadd.f32 %v1024, %v1088
        %v1105 = vadd.f32 %v1025, %v1089
        %v1106 = vld [vmem:[%s407] sm:$0xff]
        %v1107 = vld [vmem:[%s407 + $0x8] sm:$0xff]
        %v1108 = vld [vmem:[%s407 + $0x10] sm:$0xff]
        %v1109 = vld [vmem:[%s407 + $0x18] sm:$0xff]
        %v1110 = vld [vmem:[%s407 + $0x20] sm:$0xff]
        %v1111 = vld [vmem:[%s407 + $0x28] sm:$0xff]
        %v1112 = vld [vmem:[%s407 + $0x30] sm:$0xff]
        %v1113 = vld [vmem:[%s407 + $0x38] sm:$0xff]
        %v1114 = vld [vmem:[%s407 + $0x40] sm:$0xff]
        %v1115 = vld [vmem:[%s407 + $0x48] sm:$0xff]
        %v1116 = vld [vmem:[%s407 + $0x50] sm:$0xff]
        %v1117 = vld [vmem:[%s407 + $0x58] sm:$0xff]
        %v1118 = vld [vmem:[%s407 + $0x60] sm:$0xff]
        %v1119 = vld [vmem:[%s407 + $0x68] sm:$0xff]
        %v1120 = vld [vmem:[%s407 + $0x70] sm:$0xff]
        %v1121 = vld [vmem:[%s407 + $0x78] sm:$0xff]
        %1122 = vrot.lane.b32.xlu0 %v898, 127
        %v1123 = vpop.permute.xlu0 %1122
        %1124 = vrot.lane.b32.xlu0 %v899, 127
        %v1125 = vpop.permute.xlu0 %1124
        %1126 = vrot.lane.b32.xlu0 %v900, 127
        %v1127 = vpop.permute.xlu0 %1126
        %1128 = vrot.lane.b32.xlu0 %v901, 127
        %v1129 = vpop.permute.xlu0 %1128
        %1130 = vrot.lane.b32.xlu0 %v902, 127
        %v1131 = vpop.permute.xlu0 %1130
        %1132 = vrot.lane.b32.xlu0 %v903, 127
        %v1133 = vpop.permute.xlu0 %1132
        %1134 = vrot.lane.b32.xlu0 %v904, 127
        %v1135 = vpop.permute.xlu0 %1134
        %1136 = vrot.lane.b32.xlu0 %v905, 127
        %v1137 = vpop.permute.xlu0 %1136
        %1138 = vrot.lane.b32.xlu0 %v906, 127
        %v1139 = vpop.permute.xlu0 %1138
        %1140 = vrot.lane.b32.xlu0 %v907, 127
        %v1141 = vpop.permute.xlu0 %1140
        %1142 = vrot.lane.b32.xlu0 %v908, 127
        %v1143 = vpop.permute.xlu0 %1142
        %1144 = vrot.lane.b32.xlu0 %v909, 127
        %v1145 = vpop.permute.xlu0 %1144
        %1146 = vrot.lane.b32.xlu0 %v910, 127
        %v1147 = vpop.permute.xlu0 %1146
        %1148 = vrot.lane.b32.xlu0 %v911, 127
        %v1149 = vpop.permute.xlu0 %1148
        %1150 = vrot.lane.b32.xlu0 %v912, 127
        %v1151 = vpop.permute.xlu0 %1150
        %1152 = vrot.lane.b32.xlu0 %v913, 127
        %v1153 = vpop.permute.xlu0 %1152
        %v1154 = vmul.f32 %v1106, %v1123
        %v1155 = vmul.f32 %v1107, %v1125
        %v1156 = vmul.f32 %v1108, %v1127
        %v1157 = vmul.f32 %v1109, %v1129
        %v1158 = vmul.f32 %v1110, %v1131
        %v1159 = vmul.f32 %v1111, %v1133
        %v1160 = vmul.f32 %v1112, %v1135
        %v1161 = vmul.f32 %v1113, %v1137
        %v1162 = vmul.f32 %v1114, %v1139
        %v1163 = vmul.f32 %v1115, %v1141
        %v1164 = vmul.f32 %v1116, %v1143
        %v1165 = vmul.f32 %v1117, %v1145
        %v1166 = vmul.f32 %v1118, %v1147
        %v1167 = vmul.f32 %v1119, %v1149
        %v1168 = vmul.f32 %v1120, %v1151
        %v1169 = vmul.f32 %v1121, %v1153
        %v1170 = vadd.f32 %v1090, %v1154
        %v1171 = vadd.f32 %v1091, %v1155
        %v1172 = vadd.f32 %v1092, %v1156
        %v1173 = vadd.f32 %v1093, %v1157
        %v1174 = vadd.f32 %v1094, %v1158
        %v1175 = vadd.f32 %v1095, %v1159
        %v1176 = vadd.f32 %v1096, %v1160
        %v1177 = vadd.f32 %v1097, %v1161
        %v1178 = vadd.f32 %v1098, %v1162
        %v1179 = vadd.f32 %v1099, %v1163
        %v1180 = vadd.f32 %v1100, %v1164
        %v1181 = vadd.f32 %v1101, %v1165
        %v1182 = vadd.f32 %v1102, %v1166
        %v1183 = vadd.f32 %v1103, %v1167
        %v1184 = vadd.f32 %v1104, %v1168
        %v1185 = vadd.f32 %v1105, %v1169
        %v1186 = vld [vmem:[%s488] sm:$0xff]
        %v1187 = vld [vmem:[%s488 + $0x8] sm:$0xff]
        %v1188 = vld [vmem:[%s488 + $0x10] sm:$0xff]
        %v1189 = vld [vmem:[%s488 + $0x18] sm:$0xff]
        %v1190 = vld [vmem:[%s488 + $0x20] sm:$0xff]
        %v1191 = vld [vmem:[%s488 + $0x28] sm:$0xff]
        %v1192 = vld [vmem:[%s488 + $0x30] sm:$0xff]
        %v1193 = vld [vmem:[%s488 + $0x38] sm:$0xff]
        %v1194 = vld [vmem:[%s488 + $0x40] sm:$0xff]
        %v1195 = vld [vmem:[%s488 + $0x48] sm:$0xff]
        %v1196 = vld [vmem:[%s488 + $0x50] sm:$0xff]
        %v1197 = vld [vmem:[%s488 + $0x58] sm:$0xff]
        %v1198 = vld [vmem:[%s488 + $0x60] sm:$0xff]
        %v1199 = vld [vmem:[%s488 + $0x68] sm:$0xff]
        %v1200 = vld [vmem:[%s488 + $0x70] sm:$0xff]
        %v1201 = vld [vmem:[%s488 + $0x78] sm:$0xff]
        %1202 = vrot.lane.b32.xlu0 %v898, 126
        %v1203 = vpop.permute.xlu0 %1202
        %1204 = vrot.lane.b32.xlu0 %v899, 126
        %v1205 = vpop.permute.xlu0 %1204
        %1206 = vrot.lane.b32.xlu0 %v900, 126
        %v1207 = vpop.permute.xlu0 %1206
        %1208 = vrot.lane.b32.xlu0 %v901, 126
        %v1209 = vpop.permute.xlu0 %1208
        %1210 = vrot.lane.b32.xlu0 %v902, 126
        %v1211 = vpop.permute.xlu0 %1210
        %1212 = vrot.lane.b32.xlu0 %v903, 126
        %v1213 = vpop.permute.xlu0 %1212
        %1214 = vrot.lane.b32.xlu0 %v904, 126
        %v1215 = vpop.permute.xlu0 %1214
        %1216 = vrot.lane.b32.xlu0 %v905, 126
        %v1217 = vpop.permute.xlu0 %1216
        %1218 = vrot.lane.b32.xlu0 %v906, 126
        %v1219 = vpop.permute.xlu0 %1218
        %1220 = vrot.lane.b32.xlu0 %v907, 126
        %v1221 = vpop.permute.xlu0 %1220
        %1222 = vrot.lane.b32.xlu0 %v908, 126
        %v1223 = vpop.permute.xlu0 %1222
        %1224 = vrot.lane.b32.xlu0 %v909, 126
        %v1225 = vpop.permute.xlu0 %1224
        %1226 = vrot.lane.b32.xlu0 %v910, 126
        %v1227 = vpop.permute.xlu0 %1226
        %1228 = vrot.lane.b32.xlu0 %v911, 126
        %v1229 = vpop.permute.xlu0 %1228
        %1230 = vrot.lane.b32.xlu0 %v912, 126
        %v1231 = vpop.permute.xlu0 %1230
        %1232 = vrot.lane.b32.xlu0 %v913, 126
        %v1233 = vpop.permute.xlu0 %1232
        %v1234 = vmul.f32 %v1186, %v1203
        %v1235 = vmul.f32 %v1187, %v1205
        %v1236 = vmul.f32 %v1188, %v1207
        %v1237 = vmul.f32 %v1189, %v1209
        %v1238 = vmul.f32 %v1190, %v1211
        %v1239 = vmul.f32 %v1191, %v1213
        %v1240 = vmul.f32 %v1192, %v1215
        %v1241 = vmul.f32 %v1193, %v1217
        %v1242 = vmul.f32 %v1194, %v1219
        %v1243 = vmul.f32 %v1195, %v1221
        %v1244 = vmul.f32 %v1196, %v1223
        %v1245 = vmul.f32 %v1197, %v1225
        %v1246 = vmul.f32 %v1198, %v1227
        %v1247 = vmul.f32 %v1199, %v1229
        %v1248 = vmul.f32 %v1200, %v1231
        %v1249 = vmul.f32 %v1201, %v1233
        %v1250 = vadd.f32 %v1170, %v1234
        %v1251 = vadd.f32 %v1171, %v1235
        %v1252 = vadd.f32 %v1172, %v1236
        %v1253 = vadd.f32 %v1173, %v1237
        %v1254 = vadd.f32 %v1174, %v1238
        %v1255 = vadd.f32 %v1175, %v1239
        %v1256 = vadd.f32 %v1176, %v1240
        %v1257 = vadd.f32 %v1177, %v1241
        %v1258 = vadd.f32 %v1178, %v1242
        %v1259 = vadd.f32 %v1179, %v1243
        %v1260 = vadd.f32 %v1180, %v1244
        %v1261 = vadd.f32 %v1181, %v1245
        %v1262 = vadd.f32 %v1182, %v1246
        %v1263 = vadd.f32 %v1183, %v1247
        %v1264 = vadd.f32 %v1184, %v1248
        %v1265 = vadd.f32 %v1185, %v1249
        %s1266 = scalar_lea.vmem %s1, 64
        %v1267 = vld [vmem:[%s1266] sm:$0xf]
        %v1268 = vld [vmem:[%s1266 + $0x4] sm:$0xf]
        %v1269 = vld [vmem:[%s1266 + $0x8] sm:$0xf]
        %v1270 = vld [vmem:[%s1266 + $0xc] sm:$0xf]
        %v1271 = vld [vmem:[%s1266 + $0x10] sm:$0xf]
        %v1272 = vld [vmem:[%s1266 + $0x14] sm:$0xf]
        %v1273 = vld [vmem:[%s1266 + $0x18] sm:$0xf]
        %v1274 = vld [vmem:[%s1266 + $0x1c] sm:$0xf]
        %v1275 = vld [vmem:[%s1266 + $0x20] sm:$0xf]
        %v1276 = vld [vmem:[%s1266 + $0x24] sm:$0xf]
        %v1277 = vld [vmem:[%s1266 + $0x28] sm:$0xf]
        %v1278 = vld [vmem:[%s1266 + $0x2c] sm:$0xf]
        %v1279 = vld [vmem:[%s1266 + $0x30] sm:$0xf]
        %v1280 = vld [vmem:[%s1266 + $0x34] sm:$0xf]
        %v1281 = vld [vmem:[%s1266 + $0x38] sm:$0xf]
        %v1282 = vld [vmem:[%s1266 + $0x3c] sm:$0xf]
        %v1283 = vpack.c.bf16 %v1251, %v1250
        %v1284 = vpack.c.bf16 %v1253, %v1252
        %v1285 = vpack.c.bf16 %v1255, %v1254
        %v1286 = vpack.c.bf16 %v1257, %v1256
        %v1287 = vpack.c.bf16 %v1259, %v1258
        %v1288 = vpack.c.bf16 %v1261, %v1260
        %v1289 = vpack.c.bf16 %v1263, %v1262
        %v1290 = vpack.c.bf16 %v1265, %v1264
        %s1291 = scalar_lea.vmem %s3, 128
        %v1292 = vld [vmem:[%s1291] sm:$0xff]
        %v1293 = vld [vmem:[%s1291 + $0x8] sm:$0xff]
        %v1294 = vld [vmem:[%s1291 + $0x10] sm:$0xff]
        %v1295 = vld [vmem:[%s1291 + $0x18] sm:$0xff]
        %v1296 = vld [vmem:[%s1291 + $0x20] sm:$0xff]
        %v1297 = vld [vmem:[%s1291 + $0x28] sm:$0xff]
        %v1298 = vld [vmem:[%s1291 + $0x30] sm:$0xff]
        %v1299 = vld [vmem:[%s1291 + $0x38] sm:$0xff]
        %v1300 = vld [vmem:[%s1291 + $0x40] sm:$0xff]
        %v1301 = vld [vmem:[%s1291 + $0x48] sm:$0xff]
        %v1302 = vld [vmem:[%s1291 + $0x50] sm:$0xff]
        %v1303 = vld [vmem:[%s1291 + $0x58] sm:$0xff]
        %v1304 = vld [vmem:[%s1291 + $0x60] sm:$0xff]
        %v1305 = vld [vmem:[%s1291 + $0x68] sm:$0xff]
        %v1306 = vld [vmem:[%s1291 + $0x70] sm:$0xff]
        %v1307 = vld [vmem:[%s1291 + $0x78] sm:$0xff]
        %1309 = vset.pattern.permute.xlu0 0
        %1310 = vperm.xlu0 %1309, %v1292
        %v1311 = vpop.permute.xlu0 %1310
        %1314 = vset.pattern.permute.xlu0 0
        %1315 = vperm.xlu0 %1314, %v1293
        %v1316 = vpop.permute.xlu0 %1315
        %1319 = vset.pattern.permute.xlu0 0
        %1320 = vperm.xlu0 %1319, %v1294
        %v1321 = vpop.permute.xlu0 %1320
        %1324 = vset.pattern.permute.xlu0 0
        %1325 = vperm.xlu0 %1324, %v1295
        %v1326 = vpop.permute.xlu0 %1325
        %1329 = vset.pattern.permute.xlu0 0
        %1330 = vperm.xlu0 %1329, %v1296
        %v1331 = vpop.permute.xlu0 %1330
        %1334 = vset.pattern.permute.xlu0 0
        %1335 = vperm.xlu0 %1334, %v1297
        %v1336 = vpop.permute.xlu0 %1335
        %1339 = vset.pattern.permute.xlu0 0
        %1340 = vperm.xlu0 %1339, %v1298
        %v1341 = vpop.permute.xlu0 %1340
        %1344 = vset.pattern.permute.xlu0 0
        %1345 = vperm.xlu0 %1344, %v1299
        %v1346 = vpop.permute.xlu0 %1345
        %1349 = vset.pattern.permute.xlu0 0
        %1350 = vperm.xlu0 %1349, %v1300
        %v1351 = vpop.permute.xlu0 %1350
        %1354 = vset.pattern.permute.xlu0 0
        %1355 = vperm.xlu0 %1354, %v1301
        %v1356 = vpop.permute.xlu0 %1355
        %1359 = vset.pattern.permute.xlu0 0
        %1360 = vperm.xlu0 %1359, %v1302
        %v1361 = vpop.permute.xlu0 %1360
        %1364 = vset.pattern.permute.xlu0 0
        %1365 = vperm.xlu0 %1364, %v1303
        %v1366 = vpop.permute.xlu0 %1365
        %1369 = vset.pattern.permute.xlu0 0
        %1370 = vperm.xlu0 %1369, %v1304
        %v1371 = vpop.permute.xlu0 %1370
        %1374 = vset.pattern.permute.xlu0 0
        %1375 = vperm.xlu0 %1374, %v1305
        %v1376 = vpop.permute.xlu0 %1375
        %1379 = vset.pattern.permute.xlu0 0
        %1380 = vperm.xlu0 %1379, %v1306
        %v1381 = vpop.permute.xlu0 %1380
        %1384 = vset.pattern.permute.xlu0 0
        %1385 = vperm.xlu0 %1384, %v1307
        %v1386 = vpop.permute.xlu0 %1385
        %v1404 = vunpack.c.l.b16 %v1267
        %v1405 = vunpack.c.l.b16 %v1268
        %v1406 = vunpack.c.l.b16 %v1269
        %v1407 = vunpack.c.l.b16 %v1270
        %v1408 = vunpack.c.l.b16 %v1271
        %v1409 = vunpack.c.l.b16 %v1272
        %v1410 = vunpack.c.l.b16 %v1273
        %v1411 = vunpack.c.l.b16 %v1274
        %v1412 = vunpack.c.l.b16 %v1275
        %v1413 = vunpack.c.l.b16 %v1276
        %v1414 = vunpack.c.l.b16 %v1277
        %v1415 = vunpack.c.l.b16 %v1278
        %v1416 = vunpack.c.l.b16 %v1279
        %v1417 = vunpack.c.l.b16 %v1280
        %v1418 = vunpack.c.l.b16 %v1281
        %v1419 = vunpack.c.l.b16 %v1282
        %v1420 = vpack.c.b16 %v1405, %v1404
        %v1421 = vpack.c.b16 %v1407, %v1406
        %v1422 = vpack.c.b16 %v1409, %v1408
        %v1423 = vpack.c.b16 %v1411, %v1410
        %v1424 = vpack.c.b16 %v1413, %v1412
        %v1425 = vpack.c.b16 %v1415, %v1414
        %v1426 = vpack.c.b16 %v1417, %v1416
        %v1427 = vpack.c.b16 %v1419, %v1418
        %1436 = vmatprep.subr.bf16.mxu0 0
        %1437 = vmatpush1.bf16.msra.mxu0 %v1283
        %1438 = vmatprep.subr.bf16.mxu0 0
        %1439 = vmatpush1.bf16.msra.mxu0 %v1284
        %1440 = vmatprep.subr.bf16.mxu0 0
        %1441 = vmatpush1.bf16.msra.mxu0 %v1285
        %1442 = vmatprep.subr.bf16.mxu0 0
        %1443 = vmatpush1.bf16.msra.mxu0 %v1286
        %1444 = vmatprep.subr.bf16.mxu0 0
        %1445 = vmatpush1.bf16.msra.mxu0 %v1287
        %1446 = vmatprep.subr.bf16.mxu0 0
        %1447 = vmatpush1.bf16.msra.mxu0 %v1288
        %1448 = vmatprep.subr.bf16.mxu0 0
        %1449 = vmatpush1.bf16.msra.mxu0 %v1289
        %1450 = vmatprep.subr.bf16.mxu0 0
        %1451 = vmatpush1.bf16.msra.mxu0 %v1290
        %1452 = vmatprep.subr.bf16.mxu0 0
        %1453 = vmatpush1.bf16.msra.mxu0 0
        %1454 = vmatprep.subr.bf16.mxu0 0
        %1455 = vmatpush1.bf16.msra.mxu0 0
        %1456 = vmatprep.subr.bf16.mxu0 0
        %1457 = vmatpush1.bf16.msra.mxu0 0
        %1458 = vmatprep.subr.bf16.mxu0 0
        %1459 = vmatpush1.bf16.msra.mxu0 0
        %1460 = vmatprep.subr.bf16.mxu0 0
        %1461 = vmatpush1.bf16.msra.mxu0 0
        %1462 = vmatprep.subr.bf16.mxu0 0
        %1463 = vmatpush1.bf16.msra.mxu0 0
        %1464 = vmatprep.subr.bf16.mxu0 0
        %1465 = vmatpush1.bf16.msra.mxu0 0
        %1466 = vmatprep.subr.bf16.mxu0 0
        %1467 = vmatpush1.bf16.msra.mxu0 0
        %1468 = vmatprep.mubr.bf16.mxu0 0
        %1469 = vmatmul.mubr.bf16.gmra.mrb[0].mxu0 %v1420
        %v1470 = vpop.f32.mrb[0].mxu0
        %v1471 = vadd.f32 %v1311, %v1470
        %v1472 = vpop.f32.mrb[0].mxu0
        %v1473 = vpop.f32.mrb[0].mxu0
        %v1474 = vadd.f32 %v1316, %v1473
        %v1475 = vpop.f32.mrb[0].mxu0
        %1476 = vmatprep.mubr.bf16.mxu0 0
        %1477 = vmatmul.mubr.bf16.gmra.mrb[0].mxu0 %v1421
        %v1478 = vpop.f32.mrb[0].mxu0
        %v1479 = vadd.f32 %v1321, %v1478
        %v1480 = vpop.f32.mrb[0].mxu0
        %v1481 = vpop.f32.mrb[0].mxu0
        %v1482 = vadd.f32 %v1326, %v1481
        %v1483 = vpop.f32.mrb[0].mxu0
        %1484 = vmatprep.mubr.bf16.mxu0 0
        %1485 = vmatmul.mubr.bf16.gmra.mrb[0].mxu0 %v1422
        %v1486 = vpop.f32.mrb[0].mxu0
        %v1487 = vadd.f32 %v1331, %v1486
        %v1488 = vpop.f32.mrb[0].mxu0
        %v1489 = vpop.f32.mrb[0].mxu0
        %v1490 = vadd.f32 %v1336, %v1489
        %v1491 = vpop.f32.mrb[0].mxu0
        %1492 = vmatprep.mubr.bf16.mxu0 0
        %1493 = vmatmul.mubr.bf16.gmra.mrb[0].mxu0 %v1423
        %v1494 = vpop.f32.mrb[0].mxu0
        %v1495 = vadd.f32 %v1341, %v1494
        %v1496 = vpop.f32.mrb[0].mxu0
        %v1497 = vpop.f32.mrb[0].mxu0
        %v1498 = vadd.f32 %v1346, %v1497
        %v1499 = vpop.f32.mrb[0].mxu0
        %1500 = vmatprep.mubr.bf16.mxu0 0
        %1501 = vmatmul.mubr.bf16.gmra.mrb[0].mxu0 %v1424
        %v1502 = vpop.f32.mrb[0].mxu0
        %v1503 = vadd.f32 %v1351, %v1502
        %v1504 = vpop.f32.mrb[0].mxu0
        %v1505 = vpop.f32.mrb[0].mxu0
        %v1506 = vadd.f32 %v1356, %v1505
        %v1507 = vpop.f32.mrb[0].mxu0
        %1508 = vmatprep.mubr.bf16.mxu0 0
        %1509 = vmatmul.mubr.bf16.gmra.mrb[0].mxu0 %v1425
        %v1510 = vpop.f32.mrb[0].mxu0
        %v1511 = vadd.f32 %v1361, %v1510
        %v1512 = vpop.f32.mrb[0].mxu0
        %v1513 = vpop.f32.mrb[0].mxu0
        %v1514 = vadd.f32 %v1366, %v1513
        %v1515 = vpop.f32.mrb[0].mxu0
        %1516 = vmatprep.mubr.bf16.mxu0 0
        %1517 = vmatmul.mubr.bf16.gmra.mrb[0].mxu0 %v1426
        %v1518 = vpop.f32.mrb[0].mxu0
        %v1519 = vadd.f32 %v1371, %v1518
        %v1520 = vpop.f32.mrb[0].mxu0
        %v1521 = vpop.f32.mrb[0].mxu0
        %v1522 = vadd.f32 %v1376, %v1521
        %v1523 = vpop.f32.mrb[0].mxu0
        %1524 = vmatprep.mubr.bf16.mxu0 0
        %1525 = vmatmul.mubr.bf16.gmra.mrb[0].mxu0 %v1427
        %v1526 = vpop.f32.mrb[0].mxu0
        %v1527 = vadd.f32 %v1381, %v1526
        %v1528 = vpop.f32.mrb[0].mxu0
        %v1529 = vpop.f32.mrb[0].mxu0
        %v1530 = vadd.f32 %v1386, %v1529
        %v1531 = vpop.f32.mrb[0].mxu0
        %1532 = vdwg.mxu0
        %v1533 = vmul.f32 %v1471, 0.2
        %v1534 = vmul.f32 %v1474, 0.2
        %v1535 = vmul.f32 %v1479, 0.2
        %v1536 = vmul.f32 %v1482, 0.2
        %v1537 = vmul.f32 %v1487, 0.2
        %v1538 = vmul.f32 %v1490, 0.2
        %v1539 = vmul.f32 %v1495, 0.2
        %v1540 = vmul.f32 %v1498, 0.2
        %v1541 = vmul.f32 %v1503, 0.2
        %v1542 = vmul.f32 %v1506, 0.2
        %v1543 = vmul.f32 %v1511, 0.2
        %v1544 = vmul.f32 %v1514, 0.2
        %v1545 = vmul.f32 %v1519, 0.2
        %v1546 = vmul.f32 %v1522, 0.2
        %v1547 = vmul.f32 %v1527, 0.2
        %v1548 = vmul.f32 %v1530, 0.2
        %v1549 = vmax.f32 %v1471, %v1533
        %v1550 = vmax.f32 %v1474, %v1534
        %v1551 = vmax.f32 %v1479, %v1535
        %v1552 = vmax.f32 %v1482, %v1536
        %v1553 = vmax.f32 %v1487, %v1537
        %v1554 = vmax.f32 %v1490, %v1538
        %v1555 = vmax.f32 %v1495, %v1539
        %v1556 = vmax.f32 %v1498, %v1540
        %v1557 = vmax.f32 %v1503, %v1541
        %v1558 = vmax.f32 %v1506, %v1542
        %v1559 = vmax.f32 %v1511, %v1543
        %v1560 = vmax.f32 %v1514, %v1544
        %v1561 = vmax.f32 %v1519, %v1545
        %v1562 = vmax.f32 %v1522, %v1546
        %v1563 = vmax.f32 %v1527, %v1547
        %v1564 = vmax.f32 %v1530, %v1548
        %1565 = vst [vmem:[%s190 + $0x80] sm:$0xff] %v1549
        %1566 = vst [vmem:[%s190 + $0x88] sm:$0xff] %v1550
        %1567 = vst [vmem:[%s190 + $0x90] sm:$0xff] %v1551
        %1568 = vst [vmem:[%s190 + $0x98] sm:$0xff] %v1552
        %1569 = vst [vmem:[%s190 + $0xa0] sm:$0xff] %v1553
        %1570 = vst [vmem:[%s190 + $0xa8] sm:$0xff] %v1554
        %1571 = vst [vmem:[%s190 + $0xb0] sm:$0xff] %v1555
        %1572 = vst [vmem:[%s190 + $0xb8] sm:$0xff] %v1556
        %1573 = vst [vmem:[%s190 + $0xc0] sm:$0xff] %v1557
        %1574 = vst [vmem:[%s190 + $0xc8] sm:$0xff] %v1558
        %1575 = vst [vmem:[%s190 + $0xd0] sm:$0xff] %v1559
        %1576 = vst [vmem:[%s190 + $0xd8] sm:$0xff] %v1560
        %1577 = vst [vmem:[%s190 + $0xe0] sm:$0xff] %v1561
        %1578 = vst [vmem:[%s190 + $0xe8] sm:$0xff] %v1562
        %1579 = vst [vmem:[%s190 + $0xf0] sm:$0xff] %v1563
        %1580 = vst [vmem:[%s190 + $0xf8] sm:$0xff] %v1564
        %v1581 = vld [vmem:[%s195 + $0x100] sm:$0xff]
        %v1582 = vld [vmem:[%s195 + $0x108] sm:$0xff]
        %v1583 = vld [vmem:[%s195 + $0x110] sm:$0xff]
        %v1584 = vld [vmem:[%s195 + $0x118] sm:$0xff]
        %v1585 = vld [vmem:[%s195 + $0x120] sm:$0xff]
        %v1586 = vld [vmem:[%s195 + $0x128] sm:$0xff]
        %v1587 = vld [vmem:[%s195 + $0x130] sm:$0xff]
        %v1588 = vld [vmem:[%s195 + $0x138] sm:$0xff]
        %v1589 = vld [vmem:[%s195 + $0x140] sm:$0xff]
        %v1590 = vld [vmem:[%s195 + $0x148] sm:$0xff]
        %v1591 = vld [vmem:[%s195 + $0x150] sm:$0xff]
        %v1592 = vld [vmem:[%s195 + $0x158] sm:$0xff]
        %v1593 = vld [vmem:[%s195 + $0x160] sm:$0xff]
        %v1594 = vld [vmem:[%s195 + $0x168] sm:$0xff]
        %v1595 = vld [vmem:[%s195 + $0x170] sm:$0xff]
        %v1596 = vld [vmem:[%s195 + $0x178] sm:$0xff]
        %v1597 = vadd.f32 %v1549, %v1581
        %v1598 = vadd.f32 %v1550, %v1582
        %v1599 = vadd.f32 %v1551, %v1583
        %v1600 = vadd.f32 %v1552, %v1584
        %v1601 = vadd.f32 %v1553, %v1585
        %v1602 = vadd.f32 %v1554, %v1586
        %v1603 = vadd.f32 %v1555, %v1587
        %v1604 = vadd.f32 %v1556, %v1588
        %v1605 = vadd.f32 %v1557, %v1589
        %v1606 = vadd.f32 %v1558, %v1590
        %v1607 = vadd.f32 %v1559, %v1591
        %v1608 = vadd.f32 %v1560, %v1592
        %v1609 = vadd.f32 %v1561, %v1593
        %v1610 = vadd.f32 %v1562, %v1594
        %v1611 = vadd.f32 %v1563, %v1595
        %v1612 = vadd.f32 %v1564, %v1596
        %v1613 = vld [vmem:[%s213] sm:$0xff]
        %v1614 = vld [vmem:[%s213 + $0x8] sm:$0xff]
        %v1615 = vld [vmem:[%s213 + $0x10] sm:$0xff]
        %v1616 = vld [vmem:[%s213 + $0x18] sm:$0xff]
        %v1617 = vld [vmem:[%s213 + $0x20] sm:$0xff]
        %v1618 = vld [vmem:[%s213 + $0x28] sm:$0xff]
        %v1619 = vld [vmem:[%s213 + $0x30] sm:$0xff]
        %v1620 = vld [vmem:[%s213 + $0x38] sm:$0xff]
        %v1621 = vld [vmem:[%s213 + $0x40] sm:$0xff]
        %v1622 = vld [vmem:[%s213 + $0x48] sm:$0xff]
        %v1623 = vld [vmem:[%s213 + $0x50] sm:$0xff]
        %v1624 = vld [vmem:[%s213 + $0x58] sm:$0xff]
        %v1625 = vld [vmem:[%s213 + $0x60] sm:$0xff]
        %v1626 = vld [vmem:[%s213 + $0x68] sm:$0xff]
        %v1627 = vld [vmem:[%s213 + $0x70] sm:$0xff]
        %v1628 = vld [vmem:[%s213 + $0x78] sm:$0xff]
        %v1629 = vmul.f32 %v1613, %v1597
        %v1630 = vmul.f32 %v1614, %v1598
        %v1631 = vmul.f32 %v1615, %v1599
        %v1632 = vmul.f32 %v1616, %v1600
        %v1633 = vmul.f32 %v1617, %v1601
        %v1634 = vmul.f32 %v1618, %v1602
        %v1635 = vmul.f32 %v1619, %v1603
        %v1636 = vmul.f32 %v1620, %v1604
        %v1637 = vmul.f32 %v1621, %v1605
        %v1638 = vmul.f32 %v1622, %v1606
        %v1639 = vmul.f32 %v1623, %v1607
        %v1640 = vmul.f32 %v1624, %v1608
        %v1641 = vmul.f32 %v1625, %v1609
        %v1642 = vmul.f32 %v1626, %v1610
        %v1643 = vmul.f32 %v1627, %v1611
        %v1644 = vmul.f32 %v1628, %v1612
        %v1645 = vld [vmem:[%s2] sm:$0xff]
        %v1646 = vld [vmem:[%s2 + $0x8] sm:$0xff]
        %v1647 = vld [vmem:[%s2 + $0x10] sm:$0xff]
        %v1648 = vld [vmem:[%s2 + $0x18] sm:$0xff]
        %v1649 = vld [vmem:[%s2 + $0x20] sm:$0xff]
        %v1650 = vld [vmem:[%s2 + $0x28] sm:$0xff]
        %v1651 = vld [vmem:[%s2 + $0x30] sm:$0xff]
        %v1652 = vld [vmem:[%s2 + $0x38] sm:$0xff]
        %v1653 = vld [vmem:[%s2 + $0x40] sm:$0xff]
        %v1654 = vld [vmem:[%s2 + $0x48] sm:$0xff]
        %v1655 = vld [vmem:[%s2 + $0x50] sm:$0xff]
        %v1656 = vld [vmem:[%s2 + $0x58] sm:$0xff]
        %v1657 = vld [vmem:[%s2 + $0x60] sm:$0xff]
        %v1658 = vld [vmem:[%s2 + $0x68] sm:$0xff]
        %v1659 = vld [vmem:[%s2 + $0x70] sm:$0xff]
        %v1660 = vld [vmem:[%s2 + $0x78] sm:$0xff]
        %1661 = vrot.lane.b32.xlu0 %v1597, 2
        %v1662 = vpop.permute.xlu0 %1661
        %1663 = vrot.lane.b32.xlu0 %v1598, 2
        %v1664 = vpop.permute.xlu0 %1663
        %1665 = vrot.lane.b32.xlu0 %v1599, 2
        %v1666 = vpop.permute.xlu0 %1665
        %1667 = vrot.lane.b32.xlu0 %v1600, 2
        %v1668 = vpop.permute.xlu0 %1667
        %1669 = vrot.lane.b32.xlu0 %v1601, 2
        %v1670 = vpop.permute.xlu0 %1669
        %1671 = vrot.lane.b32.xlu0 %v1602, 2
        %v1672 = vpop.permute.xlu0 %1671
        %1673 = vrot.lane.b32.xlu0 %v1603, 2
        %v1674 = vpop.permute.xlu0 %1673
        %1675 = vrot.lane.b32.xlu0 %v1604, 2
        %v1676 = vpop.permute.xlu0 %1675
        %1677 = vrot.lane.b32.xlu0 %v1605, 2
        %v1678 = vpop.permute.xlu0 %1677
        %1679 = vrot.lane.b32.xlu0 %v1606, 2
        %v1680 = vpop.permute.xlu0 %1679
        %1681 = vrot.lane.b32.xlu0 %v1607, 2
        %v1682 = vpop.permute.xlu0 %1681
        %1683 = vrot.lane.b32.xlu0 %v1608, 2
        %v1684 = vpop.permute.xlu0 %1683
        %1685 = vrot.lane.b32.xlu0 %v1609, 2
        %v1686 = vpop.permute.xlu0 %1685
        %1687 = vrot.lane.b32.xlu0 %v1610, 2
        %v1688 = vpop.permute.xlu0 %1687
        %1689 = vrot.lane.b32.xlu0 %v1611, 2
        %v1690 = vpop.permute.xlu0 %1689
        %1691 = vrot.lane.b32.xlu0 %v1612, 2
        %v1692 = vpop.permute.xlu0 %1691
        %v1693 = vmul.f32 %v1645, %v1662
        %v1694 = vmul.f32 %v1646, %v1664
        %v1695 = vmul.f32 %v1647, %v1666
        %v1696 = vmul.f32 %v1648, %v1668
        %v1697 = vmul.f32 %v1649, %v1670
        %v1698 = vmul.f32 %v1650, %v1672
        %v1699 = vmul.f32 %v1651, %v1674
        %v1700 = vmul.f32 %v1652, %v1676
        %v1701 = vmul.f32 %v1653, %v1678
        %v1702 = vmul.f32 %v1654, %v1680
        %v1703 = vmul.f32 %v1655, %v1682
        %v1704 = vmul.f32 %v1656, %v1684
        %v1705 = vmul.f32 %v1657, %v1686
        %v1706 = vmul.f32 %v1658, %v1688
        %v1707 = vmul.f32 %v1659, %v1690
        %v1708 = vmul.f32 %v1660, %v1692
        %v1709 = vadd.f32 %v1629, %v1693
        %v1710 = vadd.f32 %v1630, %v1694
        %v1711 = vadd.f32 %v1631, %v1695
        %v1712 = vadd.f32 %v1632, %v1696
        %v1713 = vadd.f32 %v1633, %v1697
        %v1714 = vadd.f32 %v1634, %v1698
        %v1715 = vadd.f32 %v1635, %v1699
        %v1716 = vadd.f32 %v1636, %v1700
        %v1717 = vadd.f32 %v1637, %v1701
        %v1718 = vadd.f32 %v1638, %v1702
        %v1719 = vadd.f32 %v1639, %v1703
        %v1720 = vadd.f32 %v1640, %v1704
        %v1721 = vadd.f32 %v1641, %v1705
        %v1722 = vadd.f32 %v1642, %v1706
        %v1723 = vadd.f32 %v1643, %v1707
        %v1724 = vadd.f32 %v1644, %v1708
        %v1725 = vld [vmem:[%s326] sm:$0xff]
        %v1726 = vld [vmem:[%s326 + $0x8] sm:$0xff]
        %v1727 = vld [vmem:[%s326 + $0x10] sm:$0xff]
        %v1728 = vld [vmem:[%s326 + $0x18] sm:$0xff]
        %v1729 = vld [vmem:[%s326 + $0x20] sm:$0xff]
        %v1730 = vld [vmem:[%s326 + $0x28] sm:$0xff]
        %v1731 = vld [vmem:[%s326 + $0x30] sm:$0xff]
        %v1732 = vld [vmem:[%s326 + $0x38] sm:$0xff]
        %v1733 = vld [vmem:[%s326 + $0x40] sm:$0xff]
        %v1734 = vld [vmem:[%s326 + $0x48] sm:$0xff]
        %v1735 = vld [vmem:[%s326 + $0x50] sm:$0xff]
        %v1736 = vld [vmem:[%s326 + $0x58] sm:$0xff]
        %v1737 = vld [vmem:[%s326 + $0x60] sm:$0xff]
        %v1738 = vld [vmem:[%s326 + $0x68] sm:$0xff]
        %v1739 = vld [vmem:[%s326 + $0x70] sm:$0xff]
        %v1740 = vld [vmem:[%s326 + $0x78] sm:$0xff]
        %1741 = vrot.lane.b32.xlu0 %v1597, 1
        %v1742 = vpop.permute.xlu0 %1741
        %1743 = vrot.lane.b32.xlu0 %v1598, 1
        %v1744 = vpop.permute.xlu0 %1743
        %1745 = vrot.lane.b32.xlu0 %v1599, 1
        %v1746 = vpop.permute.xlu0 %1745
        %1747 = vrot.lane.b32.xlu0 %v1600, 1
        %v1748 = vpop.permute.xlu0 %1747
        %1749 = vrot.lane.b32.xlu0 %v1601, 1
        %v1750 = vpop.permute.xlu0 %1749
        %1751 = vrot.lane.b32.xlu0 %v1602, 1
        %v1752 = vpop.permute.xlu0 %1751
        %1753 = vrot.lane.b32.xlu0 %v1603, 1
        %v1754 = vpop.permute.xlu0 %1753
        %1755 = vrot.lane.b32.xlu0 %v1604, 1
        %v1756 = vpop.permute.xlu0 %1755
        %1757 = vrot.lane.b32.xlu0 %v1605, 1
        %v1758 = vpop.permute.xlu0 %1757
        %1759 = vrot.lane.b32.xlu0 %v1606, 1
        %v1760 = vpop.permute.xlu0 %1759
        %1761 = vrot.lane.b32.xlu0 %v1607, 1
        %v1762 = vpop.permute.xlu0 %1761
        %1763 = vrot.lane.b32.xlu0 %v1608, 1
        %v1764 = vpop.permute.xlu0 %1763
        %1765 = vrot.lane.b32.xlu0 %v1609, 1
        %v1766 = vpop.permute.xlu0 %1765
        %1767 = vrot.lane.b32.xlu0 %v1610, 1
        %v1768 = vpop.permute.xlu0 %1767
        %1769 = vrot.lane.b32.xlu0 %v1611, 1
        %v1770 = vpop.permute.xlu0 %1769
        %1771 = vrot.lane.b32.xlu0 %v1612, 1
        %v1772 = vpop.permute.xlu0 %1771
        %v1773 = vmul.f32 %v1725, %v1742
        %v1774 = vmul.f32 %v1726, %v1744
        %v1775 = vmul.f32 %v1727, %v1746
        %v1776 = vmul.f32 %v1728, %v1748
        %v1777 = vmul.f32 %v1729, %v1750
        %v1778 = vmul.f32 %v1730, %v1752
        %v1779 = vmul.f32 %v1731, %v1754
        %v1780 = vmul.f32 %v1732, %v1756
        %v1781 = vmul.f32 %v1733, %v1758
        %v1782 = vmul.f32 %v1734, %v1760
        %v1783 = vmul.f32 %v1735, %v1762
        %v1784 = vmul.f32 %v1736, %v1764
        %v1785 = vmul.f32 %v1737, %v1766
        %v1786 = vmul.f32 %v1738, %v1768
        %v1787 = vmul.f32 %v1739, %v1770
        %v1788 = vmul.f32 %v1740, %v1772
        %v1789 = vadd.f32 %v1709, %v1773
        %v1790 = vadd.f32 %v1710, %v1774
        %v1791 = vadd.f32 %v1711, %v1775
        %v1792 = vadd.f32 %v1712, %v1776
        %v1793 = vadd.f32 %v1713, %v1777
        %v1794 = vadd.f32 %v1714, %v1778
        %v1795 = vadd.f32 %v1715, %v1779
        %v1796 = vadd.f32 %v1716, %v1780
        %v1797 = vadd.f32 %v1717, %v1781
        %v1798 = vadd.f32 %v1718, %v1782
        %v1799 = vadd.f32 %v1719, %v1783
        %v1800 = vadd.f32 %v1720, %v1784
        %v1801 = vadd.f32 %v1721, %v1785
        %v1802 = vadd.f32 %v1722, %v1786
        %v1803 = vadd.f32 %v1723, %v1787
        %v1804 = vadd.f32 %v1724, %v1788
        %v1805 = vld [vmem:[%s407] sm:$0xff]
        %v1806 = vld [vmem:[%s407 + $0x8] sm:$0xff]
        %v1807 = vld [vmem:[%s407 + $0x10] sm:$0xff]
        %v1808 = vld [vmem:[%s407 + $0x18] sm:$0xff]
        %v1809 = vld [vmem:[%s407 + $0x20] sm:$0xff]
        %v1810 = vld [vmem:[%s407 + $0x28] sm:$0xff]
        %v1811 = vld [vmem:[%s407 + $0x30] sm:$0xff]
        %v1812 = vld [vmem:[%s407 + $0x38] sm:$0xff]
        %v1813 = vld [vmem:[%s407 + $0x40] sm:$0xff]
        %v1814 = vld [vmem:[%s407 + $0x48] sm:$0xff]
        %v1815 = vld [vmem:[%s407 + $0x50] sm:$0xff]
        %v1816 = vld [vmem:[%s407 + $0x58] sm:$0xff]
        %v1817 = vld [vmem:[%s407 + $0x60] sm:$0xff]
        %v1818 = vld [vmem:[%s407 + $0x68] sm:$0xff]
        %v1819 = vld [vmem:[%s407 + $0x70] sm:$0xff]
        %v1820 = vld [vmem:[%s407 + $0x78] sm:$0xff]
        %1821 = vrot.lane.b32.xlu0 %v1597, 127
        %v1822 = vpop.permute.xlu0 %1821
        %1823 = vrot.lane.b32.xlu0 %v1598, 127
        %v1824 = vpop.permute.xlu0 %1823
        %1825 = vrot.lane.b32.xlu0 %v1599, 127
        %v1826 = vpop.permute.xlu0 %1825
        %1827 = vrot.lane.b32.xlu0 %v1600, 127
        %v1828 = vpop.permute.xlu0 %1827
        %1829 = vrot.lane.b32.xlu0 %v1601, 127
        %v1830 = vpop.permute.xlu0 %1829
        %1831 = vrot.lane.b32.xlu0 %v1602, 127
        %v1832 = vpop.permute.xlu0 %1831
        %1833 = vrot.lane.b32.xlu0 %v1603, 127
        %v1834 = vpop.permute.xlu0 %1833
        %1835 = vrot.lane.b32.xlu0 %v1604, 127
        %v1836 = vpop.permute.xlu0 %1835
        %1837 = vrot.lane.b32.xlu0 %v1605, 127
        %v1838 = vpop.permute.xlu0 %1837
        %1839 = vrot.lane.b32.xlu0 %v1606, 127
        %v1840 = vpop.permute.xlu0 %1839
        %1841 = vrot.lane.b32.xlu0 %v1607, 127
        %v1842 = vpop.permute.xlu0 %1841
        %1843 = vrot.lane.b32.xlu0 %v1608, 127
        %v1844 = vpop.permute.xlu0 %1843
        %1845 = vrot.lane.b32.xlu0 %v1609, 127
        %v1846 = vpop.permute.xlu0 %1845
        %1847 = vrot.lane.b32.xlu0 %v1610, 127
        %v1848 = vpop.permute.xlu0 %1847
        %1849 = vrot.lane.b32.xlu0 %v1611, 127
        %v1850 = vpop.permute.xlu0 %1849
        %1851 = vrot.lane.b32.xlu0 %v1612, 127
        %v1852 = vpop.permute.xlu0 %1851
        %v1853 = vmul.f32 %v1805, %v1822
        %v1854 = vmul.f32 %v1806, %v1824
        %v1855 = vmul.f32 %v1807, %v1826
        %v1856 = vmul.f32 %v1808, %v1828
        %v1857 = vmul.f32 %v1809, %v1830
        %v1858 = vmul.f32 %v1810, %v1832
        %v1859 = vmul.f32 %v1811, %v1834
        %v1860 = vmul.f32 %v1812, %v1836
        %v1861 = vmul.f32 %v1813, %v1838
        %v1862 = vmul.f32 %v1814, %v1840
        %v1863 = vmul.f32 %v1815, %v1842
        %v1864 = vmul.f32 %v1816, %v1844
        %v1865 = vmul.f32 %v1817, %v1846
        %v1866 = vmul.f32 %v1818, %v1848
        %v1867 = vmul.f32 %v1819, %v1850
        %v1868 = vmul.f32 %v1820, %v1852
        %v1869 = vadd.f32 %v1789, %v1853
        %v1870 = vadd.f32 %v1790, %v1854
        %v1871 = vadd.f32 %v1791, %v1855
        %v1872 = vadd.f32 %v1792, %v1856
        %v1873 = vadd.f32 %v1793, %v1857
        %v1874 = vadd.f32 %v1794, %v1858
        %v1875 = vadd.f32 %v1795, %v1859
        %v1876 = vadd.f32 %v1796, %v1860
        %v1877 = vadd.f32 %v1797, %v1861
        %v1878 = vadd.f32 %v1798, %v1862
        %v1879 = vadd.f32 %v1799, %v1863
        %v1880 = vadd.f32 %v1800, %v1864
        %v1881 = vadd.f32 %v1801, %v1865
        %v1882 = vadd.f32 %v1802, %v1866
        %v1883 = vadd.f32 %v1803, %v1867
        %v1884 = vadd.f32 %v1804, %v1868
        %v1885 = vld [vmem:[%s488] sm:$0xff]
        %v1886 = vld [vmem:[%s488 + $0x8] sm:$0xff]
        %v1887 = vld [vmem:[%s488 + $0x10] sm:$0xff]
        %v1888 = vld [vmem:[%s488 + $0x18] sm:$0xff]
        %v1889 = vld [vmem:[%s488 + $0x20] sm:$0xff]
        %v1890 = vld [vmem:[%s488 + $0x28] sm:$0xff]
        %v1891 = vld [vmem:[%s488 + $0x30] sm:$0xff]
        %v1892 = vld [vmem:[%s488 + $0x38] sm:$0xff]
        %v1893 = vld [vmem:[%s488 + $0x40] sm:$0xff]
        %v1894 = vld [vmem:[%s488 + $0x48] sm:$0xff]
        %v1895 = vld [vmem:[%s488 + $0x50] sm:$0xff]
        %v1896 = vld [vmem:[%s488 + $0x58] sm:$0xff]
        %v1897 = vld [vmem:[%s488 + $0x60] sm:$0xff]
        %v1898 = vld [vmem:[%s488 + $0x68] sm:$0xff]
        %v1899 = vld [vmem:[%s488 + $0x70] sm:$0xff]
        %v1900 = vld [vmem:[%s488 + $0x78] sm:$0xff]
        %1901 = vrot.lane.b32.xlu0 %v1597, 126
        %v1902 = vpop.permute.xlu0 %1901
        %1903 = vrot.lane.b32.xlu0 %v1598, 126
        %v1904 = vpop.permute.xlu0 %1903
        %1905 = vrot.lane.b32.xlu0 %v1599, 126
        %v1906 = vpop.permute.xlu0 %1905
        %1907 = vrot.lane.b32.xlu0 %v1600, 126
        %v1908 = vpop.permute.xlu0 %1907
        %1909 = vrot.lane.b32.xlu0 %v1601, 126
        %v1910 = vpop.permute.xlu0 %1909
        %1911 = vrot.lane.b32.xlu0 %v1602, 126
        %v1912 = vpop.permute.xlu0 %1911
        %1913 = vrot.lane.b32.xlu0 %v1603, 126
        %v1914 = vpop.permute.xlu0 %1913
        %1915 = vrot.lane.b32.xlu0 %v1604, 126
        %v1916 = vpop.permute.xlu0 %1915
        %1917 = vrot.lane.b32.xlu0 %v1605, 126
        %v1918 = vpop.permute.xlu0 %1917
        %1919 = vrot.lane.b32.xlu0 %v1606, 126
        %v1920 = vpop.permute.xlu0 %1919
        %1921 = vrot.lane.b32.xlu0 %v1607, 126
        %v1922 = vpop.permute.xlu0 %1921
        %1923 = vrot.lane.b32.xlu0 %v1608, 126
        %v1924 = vpop.permute.xlu0 %1923
        %1925 = vrot.lane.b32.xlu0 %v1609, 126
        %v1926 = vpop.permute.xlu0 %1925
        %1927 = vrot.lane.b32.xlu0 %v1610, 126
        %v1928 = vpop.permute.xlu0 %1927
        %1929 = vrot.lane.b32.xlu0 %v1611, 126
        %v1930 = vpop.permute.xlu0 %1929
        %1931 = vrot.lane.b32.xlu0 %v1612, 126
        %v1932 = vpop.permute.xlu0 %1931
        %v1933 = vmul.f32 %v1885, %v1902
        %v1934 = vmul.f32 %v1886, %v1904
        %v1935 = vmul.f32 %v1887, %v1906
        %v1936 = vmul.f32 %v1888, %v1908
        %v1937 = vmul.f32 %v1889, %v1910
        %v1938 = vmul.f32 %v1890, %v1912
        %v1939 = vmul.f32 %v1891, %v1914
        %v1940 = vmul.f32 %v1892, %v1916
        %v1941 = vmul.f32 %v1893, %v1918
        %v1942 = vmul.f32 %v1894, %v1920
        %v1943 = vmul.f32 %v1895, %v1922
        %v1944 = vmul.f32 %v1896, %v1924
        %v1945 = vmul.f32 %v1897, %v1926
        %v1946 = vmul.f32 %v1898, %v1928
        %v1947 = vmul.f32 %v1899, %v1930
        %v1948 = vmul.f32 %v1900, %v1932
        %v1949 = vadd.f32 %v1869, %v1933
        %v1950 = vadd.f32 %v1870, %v1934
        %v1951 = vadd.f32 %v1871, %v1935
        %v1952 = vadd.f32 %v1872, %v1936
        %v1953 = vadd.f32 %v1873, %v1937
        %v1954 = vadd.f32 %v1874, %v1938
        %v1955 = vadd.f32 %v1875, %v1939
        %v1956 = vadd.f32 %v1876, %v1940
        %v1957 = vadd.f32 %v1877, %v1941
        %v1958 = vadd.f32 %v1878, %v1942
        %v1959 = vadd.f32 %v1879, %v1943
        %v1960 = vadd.f32 %v1880, %v1944
        %v1961 = vadd.f32 %v1881, %v1945
        %v1962 = vadd.f32 %v1882, %v1946
        %v1963 = vadd.f32 %v1883, %v1947
        %v1964 = vadd.f32 %v1884, %v1948
        %s1965 = scalar_lea.vmem %s1, 128
        %v1966 = vld [vmem:[%s1965] sm:$0xf]
        %v1967 = vld [vmem:[%s1965 + $0x4] sm:$0xf]
        %v1968 = vld [vmem:[%s1965 + $0x8] sm:$0xf]
        %v1969 = vld [vmem:[%s1965 + $0xc] sm:$0xf]
        %v1970 = vld [vmem:[%s1965 + $0x10] sm:$0xf]
        %v1971 = vld [vmem:[%s1965 + $0x14] sm:$0xf]
        %v1972 = vld [vmem:[%s1965 + $0x18] sm:$0xf]
        %v1973 = vld [vmem:[%s1965 + $0x1c] sm:$0xf]
        %v1974 = vld [vmem:[%s1965 + $0x20] sm:$0xf]
        %v1975 = vld [vmem:[%s1965 + $0x24] sm:$0xf]
        %v1976 = vld [vmem:[%s1965 + $0x28] sm:$0xf]
        %v1977 = vld [vmem:[%s1965 + $0x2c] sm:$0xf]
        %v1978 = vld [vmem:[%s1965 + $0x30] sm:$0xf]
        %v1979 = vld [vmem:[%s1965 + $0x34] sm:$0xf]
        %v1980 = vld [vmem:[%s1965 + $0x38] sm:$0xf]
        %v1981 = vld [vmem:[%s1965 + $0x3c] sm:$0xf]
        %v1982 = vpack.c.bf16 %v1950, %v1949
        %v1983 = vpack.c.bf16 %v1952, %v1951
        %v1984 = vpack.c.bf16 %v1954, %v1953
        %v1985 = vpack.c.bf16 %v1956, %v1955
        %v1986 = vpack.c.bf16 %v1958, %v1957
        %v1987 = vpack.c.bf16 %v1960, %v1959
        %v1988 = vpack.c.bf16 %v1962, %v1961
        %v1989 = vpack.c.bf16 %v1964, %v1963
        %s1990 = scalar_lea.vmem %s3, 256
        %v1991 = vld [vmem:[%s1990] sm:$0xff]
        %v1992 = vld [vmem:[%s1990 + $0x8] sm:$0xff]
        %v1993 = vld [vmem:[%s1990 + $0x10] sm:$0xff]
        %v1994 = vld [vmem:[%s1990 + $0x18] sm:$0xff]
        %v1995 = vld [vmem:[%s1990 + $0x20] sm:$0xff]
        %v1996 = vld [vmem:[%s1990 + $0x28] sm:$0xff]
        %v1997 = vld [vmem:[%s1990 + $0x30] sm:$0xff]
        %v1998 = vld [vmem:[%s1990 + $0x38] sm:$0xff]
        %v1999 = vld [vmem:[%s1990 + $0x40] sm:$0xff]
        %v2000 = vld [vmem:[%s1990 + $0x48] sm:$0xff]
        %v2001 = vld [vmem:[%s1990 + $0x50] sm:$0xff]
        %v2002 = vld [vmem:[%s1990 + $0x58] sm:$0xff]
        %v2003 = vld [vmem:[%s1990 + $0x60] sm:$0xff]
        %v2004 = vld [vmem:[%s1990 + $0x68] sm:$0xff]
        %v2005 = vld [vmem:[%s1990 + $0x70] sm:$0xff]
        %v2006 = vld [vmem:[%s1990 + $0x78] sm:$0xff]
        %2008 = vset.pattern.permute.xlu0 0
        %2009 = vperm.xlu0 %2008, %v1991
        %v2010 = vpop.permute.xlu0 %2009
        %2013 = vset.pattern.permute.xlu0 0
        %2014 = vperm.xlu0 %2013, %v1992
        %v2015 = vpop.permute.xlu0 %2014
        %2018 = vset.pattern.permute.xlu0 0
        %2019 = vperm.xlu0 %2018, %v1993
        %v2020 = vpop.permute.xlu0 %2019
        %2023 = vset.pattern.permute.xlu0 0
        %2024 = vperm.xlu0 %2023, %v1994
        %v2025 = vpop.permute.xlu0 %2024
        %2028 = vset.pattern.permute.xlu0 0
        %2029 = vperm.xlu0 %2028, %v1995
        %v2030 = vpop.permute.xlu0 %2029
        %2033 = vset.pattern.permute.xlu0 0
        %2034 = vperm.xlu0 %2033, %v1996
        %v2035 = vpop.permute.xlu0 %2034
        %2038 = vset.pattern.permute.xlu0 0
        %2039 = vperm.xlu0 %2038, %v1997
        %v2040 = vpop.permute.xlu0 %2039
        %2043 = vset.pattern.permute.xlu0 0
        %2044 = vperm.xlu0 %2043, %v1998
        %v2045 = vpop.permute.xlu0 %2044
        %2048 = vset.pattern.permute.xlu0 0
        %2049 = vperm.xlu0 %2048, %v1999
        %v2050 = vpop.permute.xlu0 %2049
        %2053 = vset.pattern.permute.xlu0 0
        %2054 = vperm.xlu0 %2053, %v2000
        %v2055 = vpop.permute.xlu0 %2054
        %2058 = vset.pattern.permute.xlu0 0
        %2059 = vperm.xlu0 %2058, %v2001
        %v2060 = vpop.permute.xlu0 %2059
        %2063 = vset.pattern.permute.xlu0 0
        %2064 = vperm.xlu0 %2063, %v2002
        %v2065 = vpop.permute.xlu0 %2064
        %2068 = vset.pattern.permute.xlu0 0
        %2069 = vperm.xlu0 %2068, %v2003
        %v2070 = vpop.permute.xlu0 %2069
        %2073 = vset.pattern.permute.xlu0 0
        %2074 = vperm.xlu0 %2073, %v2004
        %v2075 = vpop.permute.xlu0 %2074
        %2078 = vset.pattern.permute.xlu0 0
        %2079 = vperm.xlu0 %2078, %v2005
        %v2080 = vpop.permute.xlu0 %2079
        %2083 = vset.pattern.permute.xlu0 0
        %2084 = vperm.xlu0 %2083, %v2006
        %v2085 = vpop.permute.xlu0 %2084
        %v2103 = vunpack.c.l.b16 %v1966
        %v2104 = vunpack.c.l.b16 %v1967
        %v2105 = vunpack.c.l.b16 %v1968
        %v2106 = vunpack.c.l.b16 %v1969
        %v2107 = vunpack.c.l.b16 %v1970
        %v2108 = vunpack.c.l.b16 %v1971
        %v2109 = vunpack.c.l.b16 %v1972
        %v2110 = vunpack.c.l.b16 %v1973
        %v2111 = vunpack.c.l.b16 %v1974
        %v2112 = vunpack.c.l.b16 %v1975
        %v2113 = vunpack.c.l.b16 %v1976
        %v2114 = vunpack.c.l.b16 %v1977
        %v2115 = vunpack.c.l.b16 %v1978
        %v2116 = vunpack.c.l.b16 %v1979
        %v2117 = vunpack.c.l.b16 %v1980
        %v2118 = vunpack.c.l.b16 %v1981
        %v2119 = vpack.c.b16 %v2104, %v2103
        %v2120 = vpack.c.b16 %v2106, %v2105
        %v2121 = vpack.c.b16 %v2108, %v2107
        %v2122 = vpack.c.b16 %v2110, %v2109
        %v2123 = vpack.c.b16 %v2112, %v2111
        %v2124 = vpack.c.b16 %v2114, %v2113
        %v2125 = vpack.c.b16 %v2116, %v2115
        %v2126 = vpack.c.b16 %v2118, %v2117
        %2135 = vmatprep.subr.bf16.mxu0 0
        %2136 = vmatpush1.bf16.msra.mxu0 %v1982
        %2137 = vmatprep.subr.bf16.mxu0 0
        %2138 = vmatpush1.bf16.msra.mxu0 %v1983
        %2139 = vmatprep.subr.bf16.mxu0 0
        %2140 = vmatpush1.bf16.msra.mxu0 %v1984
        %2141 = vmatprep.subr.bf16.mxu0 0
        %2142 = vmatpush1.bf16.msra.mxu0 %v1985
        %2143 = vmatprep.subr.bf16.mxu0 0
        %2144 = vmatpush1.bf16.msra.mxu0 %v1986
        %2145 = vmatprep.subr.bf16.mxu0 0
        %2146 = vmatpush1.bf16.msra.mxu0 %v1987
        %2147 = vmatprep.subr.bf16.mxu0 0
        %2148 = vmatpush1.bf16.msra.mxu0 %v1988
        %2149 = vmatprep.subr.bf16.mxu0 0
        %2150 = vmatpush1.bf16.msra.mxu0 %v1989
        %2151 = vmatprep.subr.bf16.mxu0 0
        %2152 = vmatpush1.bf16.msra.mxu0 0
        %2153 = vmatprep.subr.bf16.mxu0 0
        %2154 = vmatpush1.bf16.msra.mxu0 0
        %2155 = vmatprep.subr.bf16.mxu0 0
        %2156 = vmatpush1.bf16.msra.mxu0 0
        %2157 = vmatprep.subr.bf16.mxu0 0
        %2158 = vmatpush1.bf16.msra.mxu0 0
        %2159 = vmatprep.subr.bf16.mxu0 0
        %2160 = vmatpush1.bf16.msra.mxu0 0
        %2161 = vmatprep.subr.bf16.mxu0 0
        %2162 = vmatpush1.bf16.msra.mxu0 0
        %2163 = vmatprep.subr.bf16.mxu0 0
        %2164 = vmatpush1.bf16.msra.mxu0 0
        %2165 = vmatprep.subr.bf16.mxu0 0
        %2166 = vmatpush1.bf16.msra.mxu0 0
        %2167 = vmatprep.mubr.bf16.mxu0 0
        %2168 = vmatmul.mubr.bf16.gmra.mrb[0].mxu0 %v2119
        %v2169 = vpop.f32.mrb[0].mxu0
        %v2170 = vadd.f32 %v2010, %v2169
        %v2171 = vpop.f32.mrb[0].mxu0
        %v2172 = vpop.f32.mrb[0].mxu0
        %v2173 = vadd.f32 %v2015, %v2172
        %v2174 = vpop.f32.mrb[0].mxu0
        %2175 = vmatprep.mubr.bf16.mxu0 0
        %2176 = vmatmul.mubr.bf16.gmra.mrb[0].mxu0 %v2120
        %v2177 = vpop.f32.mrb[0].mxu0
        %v2178 = vadd.f32 %v2020, %v2177
        %v2179 = vpop.f32.mrb[0].mxu0
        %v2180 = vpop.f32.mrb[0].mxu0
        %v2181 = vadd.f32 %v2025, %v2180
        %v2182 = vpop.f32.mrb[0].mxu0
        %2183 = vmatprep.mubr.bf16.mxu0 0
        %2184 = vmatmul.mubr.bf16.gmra.mrb[0].mxu0 %v2121
        %v2185 = vpop.f32.mrb[0].mxu0
        %v2186 = vadd.f32 %v2030, %v2185
        %v2187 = vpop.f32.mrb[0].mxu0
        %v2188 = vpop.f32.mrb[0].mxu0
        %v2189 = vadd.f32 %v2035, %v2188
        %v2190 = vpop.f32.mrb[0].mxu0
        %2191 = vmatprep.mubr.bf16.mxu0 0
        %2192 = vmatmul.mubr.bf16.gmra.mrb[0].mxu0 %v2122
        %v2193 = vpop.f32.mrb[0].mxu0
        %v2194 = vadd.f32 %v2040, %v2193
        %v2195 = vpop.f32.mrb[0].mxu0
        %v2196 = vpop.f32.mrb[0].mxu0
        %v2197 = vadd.f32 %v2045, %v2196
        %v2198 = vpop.f32.mrb[0].mxu0
        %2199 = vmatprep.mubr.bf16.mxu0 0
        %2200 = vmatmul.mubr.bf16.gmra.mrb[0].mxu0 %v2123
        %v2201 = vpop.f32.mrb[0].mxu0
        %v2202 = vadd.f32 %v2050, %v2201
        %v2203 = vpop.f32.mrb[0].mxu0
        %v2204 = vpop.f32.mrb[0].mxu0
        %v2205 = vadd.f32 %v2055, %v2204
        %v2206 = vpop.f32.mrb[0].mxu0
        %2207 = vmatprep.mubr.bf16.mxu0 0
        %2208 = vmatmul.mubr.bf16.gmra.mrb[0].mxu0 %v2124
        %v2209 = vpop.f32.mrb[0].mxu0
        %v2210 = vadd.f32 %v2060, %v2209
        %v2211 = vpop.f32.mrb[0].mxu0
        %v2212 = vpop.f32.mrb[0].mxu0
        %v2213 = vadd.f32 %v2065, %v2212
        %v2214 = vpop.f32.mrb[0].mxu0
        %2215 = vmatprep.mubr.bf16.mxu0 0
        %2216 = vmatmul.mubr.bf16.gmra.mrb[0].mxu0 %v2125
        %v2217 = vpop.f32.mrb[0].mxu0
        %v2218 = vadd.f32 %v2070, %v2217
        %v2219 = vpop.f32.mrb[0].mxu0
        %v2220 = vpop.f32.mrb[0].mxu0
        %v2221 = vadd.f32 %v2075, %v2220
        %v2222 = vpop.f32.mrb[0].mxu0
        %2223 = vmatprep.mubr.bf16.mxu0 0
        %2224 = vmatmul.mubr.bf16.gmra.mrb[0].mxu0 %v2126
        %v2225 = vpop.f32.mrb[0].mxu0
        %v2226 = vadd.f32 %v2080, %v2225
        %v2227 = vpop.f32.mrb[0].mxu0
        %v2228 = vpop.f32.mrb[0].mxu0
        %v2229 = vadd.f32 %v2085, %v2228
        %v2230 = vpop.f32.mrb[0].mxu0
        %2231 = vdwg.mxu0
        %v2232 = vmul.f32 %v2170, 0.2
        %v2233 = vmul.f32 %v2173, 0.2
        %v2234 = vmul.f32 %v2178, 0.2
        %v2235 = vmul.f32 %v2181, 0.2
        %v2236 = vmul.f32 %v2186, 0.2
        %v2237 = vmul.f32 %v2189, 0.2
        %v2238 = vmul.f32 %v2194, 0.2
        %v2239 = vmul.f32 %v2197, 0.2
        %v2240 = vmul.f32 %v2202, 0.2
        %v2241 = vmul.f32 %v2205, 0.2
        %v2242 = vmul.f32 %v2210, 0.2
        %v2243 = vmul.f32 %v2213, 0.2
        %v2244 = vmul.f32 %v2218, 0.2
        %v2245 = vmul.f32 %v2221, 0.2
        %v2246 = vmul.f32 %v2226, 0.2
        %v2247 = vmul.f32 %v2229, 0.2
        %v2248 = vmax.f32 %v2170, %v2232
        %v2249 = vmax.f32 %v2173, %v2233
        %v2250 = vmax.f32 %v2178, %v2234
        %v2251 = vmax.f32 %v2181, %v2235
        %v2252 = vmax.f32 %v2186, %v2236
        %v2253 = vmax.f32 %v2189, %v2237
        %v2254 = vmax.f32 %v2194, %v2238
        %v2255 = vmax.f32 %v2197, %v2239
        %v2256 = vmax.f32 %v2202, %v2240
        %v2257 = vmax.f32 %v2205, %v2241
        %v2258 = vmax.f32 %v2210, %v2242
        %v2259 = vmax.f32 %v2213, %v2243
        %v2260 = vmax.f32 %v2218, %v2244
        %v2261 = vmax.f32 %v2221, %v2245
        %v2262 = vmax.f32 %v2226, %v2246
        %v2263 = vmax.f32 %v2229, %v2247
        %2264 = vst [vmem:[%s190 + $0x100] sm:$0xff] %v2248
        %2265 = vst [vmem:[%s190 + $0x108] sm:$0xff] %v2249
        %2266 = vst [vmem:[%s190 + $0x110] sm:$0xff] %v2250
        %2267 = vst [vmem:[%s190 + $0x118] sm:$0xff] %v2251
        %2268 = vst [vmem:[%s190 + $0x120] sm:$0xff] %v2252
        %2269 = vst [vmem:[%s190 + $0x128] sm:$0xff] %v2253
        %2270 = vst [vmem:[%s190 + $0x130] sm:$0xff] %v2254
        %2271 = vst [vmem:[%s190 + $0x138] sm:$0xff] %v2255
        %2272 = vst [vmem:[%s190 + $0x140] sm:$0xff] %v2256
        %2273 = vst [vmem:[%s190 + $0x148] sm:$0xff] %v2257
        %2274 = vst [vmem:[%s190 + $0x150] sm:$0xff] %v2258
        %2275 = vst [vmem:[%s190 + $0x158] sm:$0xff] %v2259
        %2276 = vst [vmem:[%s190 + $0x160] sm:$0xff] %v2260
        %2277 = vst [vmem:[%s190 + $0x168] sm:$0xff] %v2261
        %2278 = vst [vmem:[%s190 + $0x170] sm:$0xff] %v2262
        %2279 = vst [vmem:[%s190 + $0x178] sm:$0xff] %v2263
        %v2280 = vld [vmem:[%s195 + $0x180] sm:$0xff]
        %v2281 = vld [vmem:[%s195 + $0x188] sm:$0xff]
        %v2282 = vld [vmem:[%s195 + $0x190] sm:$0xff]
        %v2283 = vld [vmem:[%s195 + $0x198] sm:$0xff]
        %v2284 = vld [vmem:[%s195 + $0x1a0] sm:$0xff]
        %v2285 = vld [vmem:[%s195 + $0x1a8] sm:$0xff]
        %v2286 = vld [vmem:[%s195 + $0x1b0] sm:$0xff]
        %v2287 = vld [vmem:[%s195 + $0x1b8] sm:$0xff]
        %v2288 = vld [vmem:[%s195 + $0x1c0] sm:$0xff]
        %v2289 = vld [vmem:[%s195 + $0x1c8] sm:$0xff]
        %v2290 = vld [vmem:[%s195 + $0x1d0] sm:$0xff]
        %v2291 = vld [vmem:[%s195 + $0x1d8] sm:$0xff]
        %v2292 = vld [vmem:[%s195 + $0x1e0] sm:$0xff]
        %v2293 = vld [vmem:[%s195 + $0x1e8] sm:$0xff]
        %v2294 = vld [vmem:[%s195 + $0x1f0] sm:$0xff]
        %v2295 = vld [vmem:[%s195 + $0x1f8] sm:$0xff]
        %2296 = vst [vmem:[%s190 + $0x180] sm:$0xff] %v2280
        %2297 = vst [vmem:[%s190 + $0x188] sm:$0xff] %v2281
        %2298 = vst [vmem:[%s190 + $0x190] sm:$0xff] %v2282
        %2299 = vst [vmem:[%s190 + $0x198] sm:$0xff] %v2283
        %2300 = vst [vmem:[%s190 + $0x1a0] sm:$0xff] %v2284
        %2301 = vst [vmem:[%s190 + $0x1a8] sm:$0xff] %v2285
        %2302 = vst [vmem:[%s190 + $0x1b0] sm:$0xff] %v2286
        %2303 = vst [vmem:[%s190 + $0x1b8] sm:$0xff] %v2287
        %2304 = vst [vmem:[%s190 + $0x1c0] sm:$0xff] %v2288
        %2305 = vst [vmem:[%s190 + $0x1c8] sm:$0xff] %v2289
        %2306 = vst [vmem:[%s190 + $0x1d0] sm:$0xff] %v2290
        %2307 = vst [vmem:[%s190 + $0x1d8] sm:$0xff] %v2291
        %2308 = vst [vmem:[%s190 + $0x1e0] sm:$0xff] %v2292
        %2309 = vst [vmem:[%s190 + $0x1e8] sm:$0xff] %v2293
        %2310 = vst [vmem:[%s190 + $0x1f0] sm:$0xff] %v2294
        %2311 = vst [vmem:[%s190 + $0x1f8] sm:$0xff] %v2295
        %s2312 = sand.u32 %s115, 1
        %s2313 = scalar_lea.sflag [#allocation3], %s2312
        %s2314 = sand.u32 %s115, 1
        %s2315 = smul.addr %s2314, 512
        %s2316 = scalar_lea.vmem [#allocation2], %s2315
        // Predicated region
        $region37: #{mta_pallas.1} parent=35 // pred_check
          %p2317 = pneg %p125
        $region38: #{mta_pallas.1} parent=35 // pred_check_branch
          %2319 = sbr.rel (%p2317) target = $region40
        $region39: #{mta_pallas.1} parent=35 // pred_region
          %s2321 = ssub.s32 8192, 8192
          %2322 = vsyncadd %s2313, %s2321
          %s2323 = smul.addr %s18, 64
          %s2324 = smul.addr %s2323, 128
          %s2325 = scalar_lea.hbm %s4, %s2324
          %s2326 = sshll.u32 %s2316, 4
          %s2327 = int_to_ptr.vmem [resolvable:$true] %s2326
          %2332 = dma.vmem_to_hbm [thread:$0]  %s2327, 8192, %s2325, %s2313, 128, 128, 8
        $region40: #{mta_pallas.1} parent=35 // pred_fallthru
          _
      $region36: #{mta_pallas.1} parent=5 // pred_fallthru
        _
      %p2333 = scmp.le.s32.totalorder 2, %s13
      // Predicated region
      $region41: #{mta_pallas.1} parent=5 // pred_check
        %p2334 = pneg %p2333
      $region42: #{mta_pallas.1} parent=5 // pred_check_branch
        %2336 = sbr.rel (%p2334) target = $region44
      $region43: #{mta_pallas.1} parent=5 // pred_region
        %s2337 = ssub.s32 %s13, 2
        // Predicated region
        $region45: #{mta_pallas.1} parent=43 // pred_check
          %p2338 = pneg %p131
        $region46: #{mta_pallas.1} parent=43 // pred_check_branch
          %2340 = sbr.rel (%p2338) target = $region48
        $region47: #{mta_pallas.1} parent=43 // pred_region
          %s2341 = sand.u32 %s116, 1
          %s2342 = scalar_lea.sflag [#allocation3], %s2341
          %s2343 = sand.u32 %s116, 1
          %s2344 = smul.addr %s2343, 512
          %s2345 = scalar_lea.vmem [#allocation2], %s2344
          %2346 = dma.done %s2342, 8192
        $region48: #{mta_pallas.1} parent=43 // pred_fallthru
          _
      $region44: #{mta_pallas.1} parent=5 // pred_fallthru
        _
    $region6: #{mta_pallas.1} parent=1 // loop_footer
      %s17 = sadd.s32 1, %s13
    $region7: #{mta_pallas.1} parent=1 // loop_footer_branch
      %12 = sbr.rel target = $region3
    $region8: #{mta_pallas.1} parent=1 // loop_exit
      _
    %2347 = vsyncpa [#allocation3], 1
    %s2348 = scalar_lea.sflag [#allocation3], 1
    %2349 = vsyncpa %s2348, 1

</llo_original>
